<compile_context>
chip_gen: v6e
topology: v6e:2x2x1
jax: 0.10.0
libtpu: 0.0.40
codegen_flags: <defaults>
</compile_context>

<pallas_src>
import numpy as np
import jax
import jax.numpy as jnp
from jax.experimental import pallas as pl
from jax.experimental.pallas import tpu as pltpu


# ----------------------------- Pallas kernel ------------------------------ #
# One grid step == one batch element.  All activations stay VMEM-resident.
#   layer1: (64,256)x(256,32) GEMM + bias + ReLU
#   layer2: gather GEMM (144,64)x(64,32) -> im2col repack (scratch) ->
#           (16,288)x(288,32) GEMM + bias + ReLU
#   layer3: gather GEMM (72,16)x(16,32) -> repack -> (8,288)x(288,32) GEMM
#           + bias + ReLU   (rows 4..7 are padding, dropped in the wrapper)

def _shared_net_kernel(p1_ref, w1_ref, b1_ref,
                       s2_ref, w2_ref, b2_ref,
                       s3_ref, w3_ref, b3_ref,
                       out_ref, col2_ref, col3_ref):
    f32 = jnp.float32
    bf16 = jnp.bfloat16

    # ---- layer 1: fused im2col GEMM (K padded 175 -> 256) + bias + ReLU ----
    h1 = jnp.dot(p1_ref[...], w1_ref[...], preferred_element_type=f32)
    h1 = jnp.maximum(h1 + b1_ref[...], 0.0)                 # (64, 32) f32
    h1 = h1.astype(bf16)
    c1 = h1.shape[1]

    # ---- layer 2: one gather GEMM + 9 slice-stores (im2col) + one GEMM -----
    g2 = jnp.dot(s2_ref[...], h1, preferred_element_type=f32)   # (9*16, 32)
    n2 = col2_ref.shape[0]
    for k in range(g2.shape[0] // n2):                      # 9 taps, unrolled
        col2_ref[:, k * c1:(k + 1) * c1] = g2[k * n2:(k + 1) * n2, :]
    h2 = jnp.dot(col2_ref[...].astype(bf16), w2_ref[...],
                 preferred_element_type=f32)                # (16, 32)
    h2 = jnp.maximum(h2 + b2_ref[...], 0.0).astype(bf16)
    c2 = h2.shape[1]

    # ---- layer 3 ------------------------------------------------------------
    g3 = jnp.dot(s3_ref[...], h2, preferred_element_type=f32)   # (9*8, 32)
    n3 = col3_ref.shape[0]
    for k in range(g3.shape[0] // n3):
        col3_ref[:, k * c2:(k + 1) * c2] = g3[k * n3:(k + 1) * n3, :]
    h3 = jnp.dot(col3_ref[...].astype(bf16), w3_ref[...],
                 preferred_element_type=f32)                # (8, 32)
    out_ref[...] = jnp.maximum(h3 + b3_ref[...], 0.0)


# --------------------------- Constant builders ----------------------------- #
# Batch-independent, tiny (< 50 KiB total), built with numpy at trace time.

def _gather_stack(Hi, Wi, K, stride, pad):
    """0/1 gather matrix S of shape (K*K*rows, Hi*Wi), rows rounded up to a
    multiple of 8.  Row (k*rows + io*Wo + jo) selects input pixel
    (stride*io+kh-pad, stride*jo+kw-pad); out-of-range taps are all-zero."""
    Ho = (Hi + 2 * pad - K) // stride + 1
    Wo = (Wi + 2 * pad - K) // stride + 1
    n_out = Ho * Wo
    rows = -(-n_out // 8) * 8
    S = np.zeros((K * K * rows, Hi * Wi), np.float32)
    for kh in range(K):
        for kw in range(K):
            kk = kh * K + kw
            for io in range(Ho):
                ii = stride * io + kh - pad
                if not 0 <= ii < Hi:
                    continue
                for jo in range(Wo):
                    ji = stride * jo + kw - pad
                    if not 0 <= ji < Wi:
                        continue
                    S[kk * rows + io * Wo + jo, ii * Wi + ji] = 1.0
    return S, Ho, Wo, rows


def _weight_stack(w):
    """(Cout, Cin, K, K) -> (K*K*Cin, Cout); row index = (kh*K+kw)*Cin + cin."""
    c_out, c_in, k, _ = w.shape
    return jnp.transpose(w, (2, 3, 1, 0)).reshape(k * k * c_in, c_out)


def _im2col_l1(x_nhwc, ksize, stride, pad):
    """Layer-1 patch extraction on the raw input; feature order (kh, kw, c)."""
    B, H, W, C = x_nhwc.shape
    xp = jnp.pad(x_nhwc, ((0, 0), (pad, pad), (pad, pad), (0, 0)))
    Ho = (H + 2 * pad - ksize) // stride + 1
    Wo = (W + 2 * pad - ksize) // stride + 1
    cols = []
    for kh in range(ksize):
        for kw in range(ksize):
            cols.append(xp[:, kh:kh + stride * Ho:stride,
                           kw:kw + stride * Wo:stride, :])
    patches = jnp.stack(cols, axis=3)                       # (B,Ho,Wo,K*K,C)
    return patches.reshape(B, Ho * Wo, ksize * ksize * C), Ho, Wo


# ------------------------------- Glue (JAX) -------------------------------- #

def shared_net_forward(params, x_nchw, *, compute_dtype=jnp.bfloat16):
    """Forward pass matching PyTorch SharedNet.forward (input NCHW)."""
    B, C_in, H, W = x_nchw.shape
    x_nhwc = jnp.transpose(x_nchw, (0, 2, 3, 1)).astype(jnp.float32)

    # Layer-1 im2col on the tiny raw input (fused by XLA); K padded 175 -> 256.
    patches, H1, W1 = _im2col_l1(x_nhwc, 5, 2, 2)            # (B, 64, 175)
    K1 = 5 * 5 * C_in
    K1p = ((K1 + 127) // 128) * 128                          # 256
    p1 = jnp.pad(patches, ((0, 0), (0, 0), (0, K1p - K1))).astype(compute_dtype)

    # Weight / bias packing (zero-padded rows of w1 keep the result exact).
    w1m = _weight_stack(params["w1"])                        # (175, 32)
    w1m = jnp.pad(w1m, ((0, K1p - K1), (0, 0))).astype(compute_dtype)
    w2m = _weight_stack(params["w2"]).astype(compute_dtype)  # (288, 32)
    w3m = _weight_stack(params["w3"]).astype(compute_dtype)  # (288, 32)
    b1 = params["b1"].reshape(1, -1).astype(jnp.float32)
    b2 = params["b2"].reshape(1, -1).astype(jnp.float32)
    b3 = params["b3"].reshape(1, -1).astype(jnp.float32)
    C1, C2, C3 = w1m.shape[1], w2m.shape[1], w3m.shape[1]

    # Batch-independent 0/1 gather matrices (0/1 -> exact in bf16).
    s2_np, H2, W2, rows2 = _gather_stack(H1, W1, 3, 2, 1)    # (144, 64)
    s3_np, H3, W3, rows3 = _gather_stack(H2, W2, 3, 2, 1)    # (72, 16)
    s2 = jnp.asarray(s2_np, compute_dtype)
    s3 = jnp.asarray(s3_np, compute_dtype)
    n3 = H3 * W3                                             # 4 valid rows

    flops = 2 * B * (H1 * W1 * K1p * C1
                     + s2.shape[0] * s2.shape[1] * C1 + rows2 * 9 * C1 * C2
                     + s3.shape[0] * s3.shape[1] * C2 + rows3 * 9 * C2 * C3)
    bytes_accessed = int(p1.size * p1.dtype.itemsize
                         + (w1m.size + w2m.size + w3m.size + s2.size + s3.size)
                         * jnp.dtype(compute_dtype).itemsize
                         + (b1.size + b2.size + b3.size) * 4
                         + B * rows3 * C3 * 4)

    grid_spec = pltpu.PrefetchScalarGridSpec(
        num_scalar_prefetch=0,
        grid=(B,),                                           # batch axis
        in_specs=[
            pl.BlockSpec((None, H1 * W1, K1p), lambda b: (b, 0, 0)),
            # Constants: index_map -> block 0 keeps them VMEM-resident.
            pl.BlockSpec(w1m.shape, lambda b: (0, 0)),
            pl.BlockSpec(b1.shape, lambda b: (0, 0)),
            pl.BlockSpec(s2.shape, lambda b: (0, 0)),
            pl.BlockSpec(w2m.shape, lambda b: (0, 0)),
            pl.BlockSpec(b2.shape, lambda b: (0, 0)),
            pl.BlockSpec(s3.shape, lambda b: (0, 0)),
            pl.BlockSpec(w3m.shape, lambda b: (0, 0)),
            pl.BlockSpec(b3.shape, lambda b: (0, 0)),
        ],
        out_specs=pl.BlockSpec((None, rows3, C3), lambda b: (b, 0, 0)),
        scratch_shapes=[pltpu.VMEM((rows2, 9 * C1), jnp.float32),   # im2col L2
                        pltpu.VMEM((rows3, 9 * C2), jnp.float32)],  # im2col L3
    )

    raw = pl.pallas_call(
        _shared_net_kernel,
        out_shape=jax.ShapeDtypeStruct((B, rows3, C3), jnp.float32),
        grid_spec=grid_spec,
        compiler_params=pltpu.CompilerParams(
            dimension_semantics=("parallel",),               # megacore on v7x
            vmem_limit_bytes=32 * 1024 * 1024),              # explicit budget
        cost_estimate=pl.CostEstimate(flops=flops, transcendentals=0,
                                      bytes_accessed=bytes_accessed),
    )(p1, w1m, b1, s2, w2m, b2, s3, w3m, b3)

    # torch Flatten on NCHW: out[b, c*(H3*W3) + s] = h3[b, s, c]  (~1 KiB).
    h3 = raw[:, :n3, :]
    return jnp.transpose(h3, (0, 2, 1)).reshape(B, C3 * n3)


# --------------------------- Parameter init -------------------------------- #

def init_params(key):
    """Deterministic init matching PyTorch Conv2d default (uniform ±1/sqrt(fan_in))."""
    ks = jax.random.split(key, 6)

    def conv_init(kw, kb, c_out, c_in, k):
        fan_in = c_in * k * k
        bound = 1.0 / jnp.sqrt(jnp.float32(fan_in))
        w = jax.random.uniform(kw, (c_out, c_in, k, k), jnp.float32, -bound, bound)
        b = jax.random.uniform(kb, (c_out,), jnp.float32, -bound, bound)
        return w, b

    w1, b1 = conv_init(ks[0], ks[1], 32, 7, 5)
    w2, b2 = conv_init(ks[2], ks[3], 32, 32, 3)
    w3, b3 = conv_init(ks[4], ks[5], 32, 32, 3)
    return dict(w1=w1, b1=b1, w2=w2, b2=b2, w3=w3, b3=b3)


# ----------------------------- Reference ----------------------------------- #

def _ref_forward(params, x_nchw):
    def conv(x, w, b, stride, pad):
        y = jax.lax.conv_general_dilated(
            x, w, window_strides=(stride, stride),
            padding=((pad, pad), (pad, pad)),
            dimension_numbers=("NCHW", "OIHW", "NCHW"))
        return jnp.maximum(y + b[None, :, None, None], 0.0)

    y = conv(x_nchw, params["w1"], params["b1"], 2, 2)
    y = conv(y, params["w2"], params["b2"], 2, 1)
    y = conv(y, params["w3"], params["b3"], 2, 1)
    return y.reshape(y.shape[0], -1)


# ------------------------------- Main --------------------------------------- #

if __name__ == "__main__":
    key = jax.random.PRNGKey(0)
    k_param, k_x = jax.random.split(key)
    params = init_params(k_param)

    # Input: batch=2, 7 channels (module requirement), 16x16 spatial, NCHW.
    x = jax.random.normal(k_x, (2, 7, 16, 16), dtype=jnp.float32)

    out = jax.jit(shared_net_forward)(params, x)
    out = jax.block_until_ready(out)

    ref = jax.block_until_ready(_ref_forward(params, x))
    assert out.shape == (2, 32 * 2 * 2), out.shape
    # Tolerance covers bf16 operand rounding (f32 MXU accumulation); pass
    # compute_dtype=jnp.float32 to shared_net_forward for a 1e-4-tight check.
    assert jnp.allclose(out, ref, atol=2e-2, rtol=2e-2), \
        float(jnp.max(jnp.abs(out - ref)))

    print("KERNEL_OK")
</pallas_src>

<mosaic_0001>
module attributes {stable_mosaic.version = 11 : i64} {
  func.func @_shared_net_kernel(%arg0: i32, %arg1: memref<1x64x256xbf16, #tpu.memory_space<vmem>>, %arg2: memref<256x32xbf16, #tpu.memory_space<vmem>>, %arg3: memref<1x32xf32, #tpu.memory_space<vmem>>, %arg4: memref<144x64xbf16, #tpu.memory_space<vmem>>, %arg5: memref<288x32xbf16, #tpu.memory_space<vmem>>, %arg6: memref<1x32xf32, #tpu.memory_space<vmem>>, %arg7: memref<72x16xbf16, #tpu.memory_space<vmem>>, %arg8: memref<288x32xbf16, #tpu.memory_space<vmem>>, %arg9: memref<1x32xf32, #tpu.memory_space<vmem>>, %arg10: memref<1x8x32xf32, #tpu.memory_space<vmem>>, %arg11: memref<16x288xf32, #tpu.memory_space<vmem>>, %arg12: memref<8x288xf32, #tpu.memory_space<vmem>>) attributes {dimension_semantics = [#tpu.dimension_semantics<parallel>], iteration_bounds = array<i64: 2>, scalar_prefetch = 0 : i64, scratch_operands = 2 : i64, tpu.core_type = #tpu.core_type<tc>, window_params = [{transform_indices = @transform_0, window_bounds = array<i64: 1, 64, 256>}, {pipeline_mode = #tpu.pipeline_mode<synchronous>, transform_indices = @transform_1, window_bounds = array<i64: 256, 32>}, {pipeline_mode = #tpu.pipeline_mode<synchronous>, transform_indices = @transform_2, window_bounds = array<i64: 1, 32>}, {pipeline_mode = #tpu.pipeline_mode<synchronous>, transform_indices = @transform_3, window_bounds = array<i64: 144, 64>}, {pipeline_mode = #tpu.pipeline_mode<synchronous>, transform_indices = @transform_4, window_bounds = array<i64: 288, 32>}, {pipeline_mode = #tpu.pipeline_mode<synchronous>, transform_indices = @transform_5, window_bounds = array<i64: 1, 32>}, {pipeline_mode = #tpu.pipeline_mode<synchronous>, transform_indices = @transform_6, window_bounds = array<i64: 72, 16>}, {pipeline_mode = #tpu.pipeline_mode<synchronous>, transform_indices = @transform_7, window_bounds = array<i64: 288, 32>}, {pipeline_mode = #tpu.pipeline_mode<synchronous>, transform_indices = @transform_8, window_bounds = array<i64: 1, 32>}, {transform_indices = @transform_9, window_bounds = array<i64: 1, 8, 32>}]} {
    %c0 = arith.constant 0 : index
    %c0_0 = arith.constant 0 : index
    %c0_1 = arith.constant 0 : index
    %0 = vector.load %arg1[%c0, %c0_0, %c0_1] : memref<1x64x256xbf16, #tpu.memory_space<vmem>>, vector<1x64x256xbf16>
    %1 = vector.shape_cast %0 : vector<1x64x256xbf16> to vector<64x256xbf16>
    %c0_2 = arith.constant 0 : index
    %c0_3 = arith.constant 0 : index
    %2 = vector.load %arg2[%c0_2, %c0_3] : memref<256x32xbf16, #tpu.memory_space<vmem>>, vector<256x32xbf16>
    %cst = arith.constant dense<0.000000e+00> : vector<64x32xf32>
    %3 = tpu.matmul %1, %2, %cst {dimension_numbers = #tpu.dot_dimension_numbers<[1], [0], [0], [1], [0, 0, 1, 1], [], []>} : vector<64x256xbf16>, vector<256x32xbf16>, vector<64x32xf32> -> vector<64x32xf32>
    %c0_4 = arith.constant 0 : index
    %c0_5 = arith.constant 0 : index
    %4 = vector.load %arg3[%c0_4, %c0_5] : memref<1x32xf32, #tpu.memory_space<vmem>>, vector<1x32xf32>
    %5 = vector.broadcast %4 : vector<1x32xf32> to vector<64x32xf32>
    %6 = arith.addf %3, %5 : vector<64x32xf32>
    %cst_6 = arith.constant 0.000000e+00 : f32
    %7 = vector.broadcast %cst_6 : f32 to vector<64x32xf32>
    %8 = arith.maximumf %6, %7 : vector<64x32xf32>
    %9 = arith.truncf %8 : vector<64x32xf32> to vector<64x32xbf16>
    %c0_7 = arith.constant 0 : index
    %c0_8 = arith.constant 0 : index
    %10 = vector.load %arg4[%c0_7, %c0_8] : memref<144x64xbf16, #tpu.memory_space<vmem>>, vector<144x64xbf16>
    %cst_9 = arith.constant dense<0.000000e+00> : vector<144x32xf32>
    %11 = tpu.matmul %10, %9, %cst_9 {dimension_numbers = #tpu.dot_dimension_numbers<[1], [0], [0], [1], [0, 0, 1, 1], [], []>} : vector<144x64xbf16>, vector<64x32xbf16>, vector<144x32xf32> -> vector<144x32xf32>
    %12 = vector.extract_strided_slice %11 {offsets = [0, 0], sizes = [16, 32], strides = [1, 1]} : vector<144x32xf32> to vector<16x32xf32>
    %c0_10 = arith.constant 0 : index
    %c0_11 = arith.constant 0 : index
    %13 = vector.load %arg11[%c0_10, %c0_11] : memref<16x288xf32, #tpu.memory_space<vmem>>, vector<16x32xf32>
    tpu.vector_store %arg11[%c0_10, %c0_11], %12 {strides = array<i32>} : memref<16x288xf32, #tpu.memory_space<vmem>>, vector<16x32xf32>,
    %14 = vector.extract_strided_slice %11 {offsets = [16, 0], sizes = [16, 32], strides = [1, 1]} : vector<144x32xf32> to vector<16x32xf32>
    %c0_12 = arith.constant 0 : index
    %c32 = arith.constant 32 : index
    %15 = vector.load %arg11[%c0_12, %c32] : memref<16x288xf32, #tpu.memory_space<vmem>>, vector<16x32xf32>
    tpu.vector_store %arg11[%c0_12, %c32], %14 {strides = array<i32>} : memref<16x288xf32, #tpu.memory_space<vmem>>, vector<16x32xf32>,
    %16 = vector.extract_strided_slice %11 {offsets = [32, 0], sizes = [16, 32], strides = [1, 1]} : vector<144x32xf32> to vector<16x32xf32>
    %c0_13 = arith.constant 0 : index
    %c64 = arith.constant 64 : index
    %17 = vector.load %arg11[%c0_13, %c64] : memref<16x288xf32, #tpu.memory_space<vmem>>, vector<16x32xf32>
    tpu.vector_store %arg11[%c0_13, %c64], %16 {strides = array<i32>} : memref<16x288xf32, #tpu.memory_space<vmem>>, vector<16x32xf32>,
    %18 = vector.extract_strided_slice %11 {offsets = [48, 0], sizes = [16, 32], strides = [1, 1]} : vector<144x32xf32> to vector<16x32xf32>
    %c0_14 = arith.constant 0 : index
    %c96 = arith.constant 96 : index
    %19 = vector.load %arg11[%c0_14, %c96] : memref<16x288xf32, #tpu.memory_space<vmem>>, vector<16x32xf32>
    tpu.vector_store %arg11[%c0_14, %c96], %18 {strides = array<i32>} : memref<16x288xf32, #tpu.memory_space<vmem>>, vector<16x32xf32>,
    %20 = vector.extract_strided_slice %11 {offsets = [64, 0], sizes = [16, 32], strides = [1, 1]} : vector<144x32xf32> to vector<16x32xf32>
    %c0_15 = arith.constant 0 : index
    %c128 = arith.constant 128 : index
    %21 = vector.load %arg11[%c0_15, %c128] : memref<16x288xf32, #tpu.memory_space<vmem>>, vector<16x32xf32>
    tpu.vector_store %arg11[%c0_15, %c128], %20 {strides = array<i32>} : memref<16x288xf32, #tpu.memory_space<vmem>>, vector<16x32xf32>,
    %22 = vector.extract_strided_slice %11 {offsets = [80, 0], sizes = [16, 32], strides = [1, 1]} : vector<144x32xf32> to vector<16x32xf32>
    %c0_16 = arith.constant 0 : index
    %c160 = arith.constant 160 : index
    %23 = vector.load %arg11[%c0_16, %c160] : memref<16x288xf32, #tpu.memory_space<vmem>>, vector<16x32xf32>
    tpu.vector_store %arg11[%c0_16, %c160], %22 {strides = array<i32>} : memref<16x288xf32, #tpu.memory_space<vmem>>, vector<16x32xf32>,
    %24 = vector.extract_strided_slice %11 {offsets = [96, 0], sizes = [16, 32], strides = [1, 1]} : vector<144x32xf32> to vector<16x32xf32>
    %c0_17 = arith.constant 0 : index
    %c192 = arith.constant 192 : index
    %25 = vector.load %arg11[%c0_17, %c192] : memref<16x288xf32, #tpu.memory_space<vmem>>, vector<16x32xf32>
    tpu.vector_store %arg11[%c0_17, %c192], %24 {strides = array<i32>} : memref<16x288xf32, #tpu.memory_space<vmem>>, vector<16x32xf32>,
    %26 = vector.extract_strided_slice %11 {offsets = [112, 0], sizes = [16, 32], strides = [1, 1]} : vector<144x32xf32> to vector<16x32xf32>
    %c0_18 = arith.constant 0 : index
    %c224 = arith.constant 224 : index
    %27 = vector.load %arg11[%c0_18, %c224] : memref<16x288xf32, #tpu.memory_space<vmem>>, vector<16x32xf32>
    tpu.vector_store %arg11[%c0_18, %c224], %26 {strides = array<i32>} : memref<16x288xf32, #tpu.memory_space<vmem>>, vector<16x32xf32>,
    %28 = vector.extract_strided_slice %11 {offsets = [128, 0], sizes = [16, 32], strides = [1, 1]} : vector<144x32xf32> to vector<16x32xf32>
    %c0_19 = arith.constant 0 : index
    %c256 = arith.constant 256 : index
    %29 = vector.load %arg11[%c0_19, %c256] : memref<16x288xf32, #tpu.memory_space<vmem>>, vector<16x32xf32>
    tpu.vector_store %arg11[%c0_19, %c256], %28 {strides = array<i32>} : memref<16x288xf32, #tpu.memory_space<vmem>>, vector<16x32xf32>,
    %c0_20 = arith.constant 0 : index
    %c0_21 = arith.constant 0 : index
    %30 = vector.load %arg11[%c0_20, %c0_21] : memref<16x288xf32, #tpu.memory_space<vmem>>, vector<16x288xf32>
    %31 = arith.truncf %30 : vector<16x288xf32> to vector<16x288xbf16>
    %c0_22 = arith.constant 0 : index
    %c0_23 = arith.constant 0 : index
    %32 = vector.load %arg5[%c0_22, %c0_23] : memref<288x32xbf16, #tpu.memory_space<vmem>>, vector<288x32xbf16>
    %cst_24 = arith.constant dense<0.000000e+00> : vector<16x32xf32>
    %33 = tpu.matmul %31, %32, %cst_24 {dimension_numbers = #tpu.dot_dimension_numbers<[1], [0], [0], [1], [0, 0, 1, 1], [], []>} : vector<16x288xbf16>, vector<288x32xbf16>, vector<16x32xf32> -> vector<16x32xf32>
    %c0_25 = arith.constant 0 : index
    %c0_26 = arith.constant 0 : index
    %34 = vector.load %arg6[%c0_25, %c0_26] : memref<1x32xf32, #tpu.memory_space<vmem>>, vector<1x32xf32>
    %35 = vector.broadcast %34 : vector<1x32xf32> to vector<16x32xf32>
    %36 = arith.addf %33, %35 : vector<16x32xf32>
    %cst_27 = arith.constant 0.000000e+00 : f32
    %37 = vector.broadcast %cst_27 : f32 to vector<16x32xf32>
    %38 = arith.maximumf %36, %37 : vector<16x32xf32>
    %39 = arith.truncf %38 : vector<16x32xf32> to vector<16x32xbf16>
    %c0_28 = arith.constant 0 : index
    %c0_29 = arith.constant 0 : index
    %40 = vector.load %arg7[%c0_28, %c0_29] : memref<72x16xbf16, #tpu.memory_space<vmem>>, vector<72x16xbf16>
    %cst_30 = arith.constant dense<0.000000e+00> : vector<72x32xf32>
    %41 = tpu.matmul %40, %39, %cst_30 {dimension_numbers = #tpu.dot_dimension_numbers<[1], [0], [0], [1], [0, 0, 1, 1], [], []>} : vector<72x16xbf16>, vector<16x32xbf16>, vector<72x32xf32> -> vector<72x32xf32>
    %42 = vector.extract_strided_slice %41 {offsets = [0, 0], sizes = [8, 32], strides = [1, 1]} : vector<72x32xf32> to vector<8x32xf32>
    %c0_31 = arith.constant 0 : index
    %c0_32 = arith.constant 0 : index
    %43 = vector.load %arg12[%c0_31, %c0_32] : memref<8x288xf32, #tpu.memory_space<vmem>>, vector<8x32xf32>
    tpu.vector_store %arg12[%c0_31, %c0_32], %42 {strides = array<i32>} : memref<8x288xf32, #tpu.memory_space<vmem>>, vector<8x32xf32>,
    %44 = vector.extract_strided_slice %41 {offsets = [8, 0], sizes = [8, 32], strides = [1, 1]} : vector<72x32xf32> to vector<8x32xf32>
    %c0_33 = arith.constant 0 : index
    %c32_34 = arith.constant 32 : index
    %45 = vector.load %arg12[%c0_33, %c32_34] : memref<8x288xf32, #tpu.memory_space<vmem>>, vector<8x32xf32>
    tpu.vector_store %arg12[%c0_33, %c32_34], %44 {strides = array<i32>} : memref<8x288xf32, #tpu.memory_space<vmem>>, vector<8x32xf32>,
    %46 = vector.extract_strided_slice %41 {offsets = [16, 0], sizes = [8, 32], strides = [1, 1]} : vector<72x32xf32> to vector<8x32xf32>
    %c0_35 = arith.constant 0 : index
    %c64_36 = arith.constant 64 : index
    %47 = vector.load %arg12[%c0_35, %c64_36] : memref<8x288xf32, #tpu.memory_space<vmem>>, vector<8x32xf32>
    tpu.vector_store %arg12[%c0_35, %c64_36], %46 {strides = array<i32>} : memref<8x288xf32, #tpu.memory_space<vmem>>, vector<8x32xf32>,
    %48 = vector.extract_strided_slice %41 {offsets = [24, 0], sizes = [8, 32], strides = [1, 1]} : vector<72x32xf32> to vector<8x32xf32>
    %c0_37 = arith.constant 0 : index
    %c96_38 = arith.constant 96 : index
    %49 = vector.load %arg12[%c0_37, %c96_38] : memref<8x288xf32, #tpu.memory_space<vmem>>, vector<8x32xf32>
    tpu.vector_store %arg12[%c0_37, %c96_38], %48 {strides = array<i32>} : memref<8x288xf32, #tpu.memory_space<vmem>>, vector<8x32xf32>,
    %50 = vector.extract_strided_slice %41 {offsets = [32, 0], sizes = [8, 32], strides = [1, 1]} : vector<72x32xf32> to vector<8x32xf32>
    %c0_39 = arith.constant 0 : index
    %c128_40 = arith.constant 128 : index
    %51 = vector.load %arg12[%c0_39, %c128_40] : memref<8x288xf32, #tpu.memory_space<vmem>>, vector<8x32xf32>
    tpu.vector_store %arg12[%c0_39, %c128_40], %50 {strides = array<i32>} : memref<8x288xf32, #tpu.memory_space<vmem>>, vector<8x32xf32>,
    %52 = vector.extract_strided_slice %41 {offsets = [40, 0], sizes = [8, 32], strides = [1, 1]} : vector<72x32xf32> to vector<8x32xf32>
    %c0_41 = arith.constant 0 : index
    %c160_42 = arith.constant 160 : index
    %53 = vector.load %arg12[%c0_41, %c160_42] : memref<8x288xf32, #tpu.memory_space<vmem>>, vector<8x32xf32>
    tpu.vector_store %arg12[%c0_41, %c160_42], %52 {strides = array<i32>} : memref<8x288xf32, #tpu.memory_space<vmem>>, vector<8x32xf32>,
    %54 = vector.extract_strided_slice %41 {offsets = [48, 0], sizes = [8, 32], strides = [1, 1]} : vector<72x32xf32> to vector<8x32xf32>
    %c0_43 = arith.constant 0 : index
    %c192_44 = arith.constant 192 : index
    %55 = vector.load %arg12[%c0_43, %c192_44] : memref<8x288xf32, #tpu.memory_space<vmem>>, vector<8x32xf32>
    tpu.vector_store %arg12[%c0_43, %c192_44], %54 {strides = array<i32>} : memref<8x288xf32, #tpu.memory_space<vmem>>, vector<8x32xf32>,
    %56 = vector.extract_strided_slice %41 {offsets = [56, 0], sizes = [8, 32], strides = [1, 1]} : vector<72x32xf32> to vector<8x32xf32>
    %c0_45 = arith.constant 0 : index
    %c224_46 = arith.constant 224 : index
    %57 = vector.load %arg12[%c0_45, %c224_46] : memref<8x288xf32, #tpu.memory_space<vmem>>, vector<8x32xf32>
    tpu.vector_store %arg12[%c0_45, %c224_46], %56 {strides = array<i32>} : memref<8x288xf32, #tpu.memory_space<vmem>>, vector<8x32xf32>,
    %58 = vector.extract_strided_slice %41 {offsets = [64, 0], sizes = [8, 32], strides = [1, 1]} : vector<72x32xf32> to vector<8x32xf32>
    %c0_47 = arith.constant 0 : index
    %c256_48 = arith.constant 256 : index
    %59 = vector.load %arg12[%c0_47, %c256_48] : memref<8x288xf32, #tpu.memory_space<vmem>>, vector<8x32xf32>
    tpu.vector_store %arg12[%c0_47, %c256_48], %58 {strides = array<i32>} : memref<8x288xf32, #tpu.memory_space<vmem>>, vector<8x32xf32>,
    %c0_49 = arith.constant 0 : index
    %c0_50 = arith.constant 0 : index
    %60 = vector.load %arg12[%c0_49, %c0_50] : memref<8x288xf32, #tpu.memory_space<vmem>>, vector<8x288xf32>
    %61 = arith.truncf %60 : vector<8x288xf32> to vector<8x288xbf16>
    %c0_51 = arith.constant 0 : index
    %c0_52 = arith.constant 0 : index
    %62 = vector.load %arg8[%c0_51, %c0_52] : memref<288x32xbf16, #tpu.memory_space<vmem>>, vector<288x32xbf16>
    %cst_53 = arith.constant dense<0.000000e+00> : vector<8x32xf32>
    %63 = tpu.matmul %61, %62, %cst_53 {dimension_numbers = #tpu.dot_dimension_numbers<[1], [0], [0], [1], [0, 0, 1, 1], [], []>} : vector<8x288xbf16>, vector<288x32xbf16>, vector<8x32xf32> -> vector<8x32xf32>
    %c0_54 = arith.constant 0 : index
    %c0_55 = arith.constant 0 : index
    %64 = vector.load %arg9[%c0_54, %c0_55] : memref<1x32xf32, #tpu.memory_space<vmem>>, vector<1x32xf32>
    %65 = vector.broadcast %64 : vector<1x32xf32> to vector<8x32xf32>
    %66 = arith.addf %63, %65 : vector<8x32xf32>
    %cst_56 = arith.constant 0.000000e+00 : f32
    %67 = vector.broadcast %cst_56 : f32 to vector<8x32xf32>
    %68 = arith.maximumf %66, %67 : vector<8x32xf32>
    %c0_57 = arith.constant 0 : index
    %c0_58 = arith.constant 0 : index
    %c0_59 = arith.constant 0 : index
    %69 = vector.load %arg10[%c0_57, %c0_58, %c0_59] : memref<1x8x32xf32, #tpu.memory_space<vmem>>, vector<1x8x32xf32>
    %70 = vector.shape_cast %69 : vector<1x8x32xf32> to vector<8x32xf32>
    %71 = vector.shape_cast %68 : vector<8x32xf32> to vector<1x8x32xf32>
    tpu.vector_store %arg10[%c0_57, %c0_58, %c0_59], %71 {strides = array<i32>} : memref<1x8x32xf32, #tpu.memory_space<vmem>>, vector<1x8x32xf32>,
    return
  }
  func.func @transform_0(%arg0: i32) -> (i32, i32, i32) {
    %c0_i32 = arith.constant 0 : i32
    %c0_i32_0 = arith.constant 0 : i32
    %c0_i32_1 = arith.constant 0 : i32
    return %arg0, %c0_i32, %c0_i32_0 : i32, i32, i32
  }
  func.func @transform_1(%arg0: i32) -> (i32, i32) {
    %c0_i32 = arith.constant 0 : i32
    %c0_i32_0 = arith.constant 0 : i32
    %c0_i32_1 = arith.constant 0 : i32
    return %c0_i32, %c0_i32_0 : i32, i32
  }
  func.func @transform_2(%arg0: i32) -> (i32, i32) {
    %c0_i32 = arith.constant 0 : i32
    %c0_i32_0 = arith.constant 0 : i32
    %c0_i32_1 = arith.constant 0 : i32
    return %c0_i32, %c0_i32_0 : i32, i32
  }
  func.func @transform_3(%arg0: i32) -> (i32, i32) {
    %c0_i32 = arith.constant 0 : i32
    %c0_i32_0 = arith.constant 0 : i32
    %c0_i32_1 = arith.constant 0 : i32
    return %c0_i32, %c0_i32_0 : i32, i32
  }
  func.func @transform_4(%arg0: i32) -> (i32, i32) {
    %c0_i32 = arith.constant 0 : i32
    %c0_i32_0 = arith.constant 0 : i32
    %c0_i32_1 = arith.constant 0 : i32
    return %c0_i32, %c0_i32_0 : i32, i32
  }
  func.func @transform_5(%arg0: i32) -> (i32, i32) {
    %c0_i32 = arith.constant 0 : i32
    %c0_i32_0 = arith.constant 0 : i32
    %c0_i32_1 = arith.constant 0 : i32
    return %c0_i32, %c0_i32_0 : i32, i32
  }
  func.func @transform_6(%arg0: i32) -> (i32, i32) {
    %c0_i32 = arith.constant 0 : i32
    %c0_i32_0 = arith.constant 0 : i32
    %c0_i32_1 = arith.constant 0 : i32
    return %c0_i32, %c0_i32_0 : i32, i32
  }
  func.func @transform_7(%arg0: i32) -> (i32, i32) {
    %c0_i32 = arith.constant 0 : i32
    %c0_i32_0 = arith.constant 0 : i32
    %c0_i32_1 = arith.constant 0 : i32
    return %c0_i32, %c0_i32_0 : i32, i32
  }
  func.func @transform_8(%arg0: i32) -> (i32, i32) {
    %c0_i32 = arith.constant 0 : i32
    %c0_i32_0 = arith.constant 0 : i32
    %c0_i32_1 = arith.constant 0 : i32
    return %c0_i32, %c0_i32_0 : i32, i32
  }
  func.func @transform_9(%arg0: i32) -> (i32, i32, i32) {
    %c0_i32 = arith.constant 0 : i32
    %c0_i32_0 = arith.constant 0 : i32
    %c0_i32_1 = arith.constant 0 : i32
    return %arg0, %c0_i32, %c0_i32_0 : i32, i32, i32
  }
}

</mosaic_0001>

<llo_original>
// kernel: shared_net_forward.1
$region0: #{shared_net_forward.1}
  #allocation0 [shape = 'u32[]', space=smem, size = 0x4, offset = 0x4, fixed_abs, tag = 'smem constant byte address 0x4 - core index']
  #allocation1 [shape = 'u32[144,128]{1,0:T(1,128)}', space=vmem, size = 0x12000, scoped, tag = 'internal scratch']
  #allocation2 [shape = 'f32[16,288]{1,0:T(8,128)}', space=vmem, size = 0x6000, scoped, tag = 'scratch operand']
  #allocation3 [shape = 'f32[8,288]{1,0:T(8,128)}', space=vmem, size = 0x3000, scoped, tag = 'scratch operand']
  %s0 = inlined_call_operand.vmem [shape: bf16[2,64,256], index: 0, kind: input, shape index: {}]
  %s1 = inlined_call_operand.vmem [shape: bf16[256,32], index: 1, kind: input, shape index: {}]
  %s2 = inlined_call_operand.vmem [shape: f32[1,32], index: 2, kind: input, shape index: {}]
  %s3 = inlined_call_operand.vmem [shape: bf16[144,64], index: 3, kind: input, shape index: {}]
  %s4 = inlined_call_operand.vmem [shape: bf16[288,32], index: 4, kind: input, shape index: {}]
  %s5 = inlined_call_operand.vmem [shape: f32[1,32], index: 5, kind: input, shape index: {}]
  %s6 = inlined_call_operand.vmem [shape: bf16[72,16], index: 6, kind: input, shape index: {}]
  %s7 = inlined_call_operand.vmem [shape: bf16[288,32], index: 7, kind: input, shape index: {}]
  %s8 = inlined_call_operand.vmem [shape: f32[1,32], index: 8, kind: input, shape index: {}]
  %s9 = inlined_call_operand.vmem [shape: f32[2,8,32], index: 9, kind: output, shape index: {}]
  %s10 = sld [smem:[#allocation0]]
  $region69: #{shared_net_forward.1} parent=0
    _
  %s12 = ssub.s32 1, %s10
  %s13 = scalar_select 0, %s12, %s10
  loop: start=0, step=1, limit=4
  $region2: #{shared_net_forward.1} parent=0 // loop_pre_header
    _
  $region3: #{shared_net_forward.1} parent=0 // loop_header
    %s15 = sphi 0, %s19
    %p16 = scmp.ge.s32.totalorder %s15, 4
    %s25 = sphi 0, %s27
    %s28 = sphi 0, %s25
    %s29 = sphi 0, %s28
    %s45 = sphi 0, %s29
    %s49 = sphi 0, %s49
    %s51 = sphi 0, %s49
    %s52 = sphi 0, %s51
    %s66 = sphi 0, %s52
    %s70 = sphi 0, %s70
    %s72 = sphi 0, %s70
    %s73 = sphi 0, %s72
    %s87 = sphi 0, %s73
    %s91 = sphi 0, %s91
    %s93 = sphi 0, %s91
    %s94 = sphi 0, %s93
    %s108 = sphi 0, %s94
    %s112 = sphi 0, %s112
    %s114 = sphi 0, %s112
    %s115 = sphi 0, %s114
    %s129 = sphi 0, %s115
    %s133 = sphi 0, %s133
    %s135 = sphi 0, %s133
    %s136 = sphi 0, %s135
    %s150 = sphi 0, %s136
    %s154 = sphi 0, %s154
    %s156 = sphi 0, %s154
    %s157 = sphi 0, %s156
    %s171 = sphi 0, %s157
    %s175 = sphi 0, %s175
    %s177 = sphi 0, %s175
    %s178 = sphi 0, %s177
    %s192 = sphi 0, %s178
    %s196 = sphi 0, %s196
    %s198 = sphi 0, %s196
    %s199 = sphi 0, %s198
    %s213 = sphi 0, %s199
    %s219 = sphi 0, %s221
    %s222 = sphi 0, %s219
    %s223 = sphi 0, %s222
    %s239 = sphi 0, %s223
  $region4: #{shared_net_forward.1} parent=0 // loop_header_branch
    %18 = sbr.rel (%p16) target = $region8
  $region5: #{shared_net_forward.1} parent=0 // loop_body
    %s20 = ssub.s32 %s15, 1
    %s21 = ssub.s32 %s15, 2
    %s22 = sadd.s32 %s15, 1
    %s23 = ssub.s32 %s15, %s22
    %p24 = scmp.eq.s32.totalorder %s23, 0
    %s26 = sadd.s32 %s25, 1
    %s27 = scalar_select %p24, %s25, %s26
    %p30 = pneg %p24
    %p31 = scmp.eq.s32.totalorder %s15, 1
    %p32 = por %p30, %p31
    %p33 = scmp.ne.s32.totalorder %s25, %s28
    %p34 = scmp.eq.s32.totalorder %s15, 0
    %p35 = por %p33, %p34
    %p36 = scmp.ne.s32.totalorder %s25, %s28
    %p37 = scmp.eq.s32.totalorder %s20, 1
    %p38 = por %p36, %p37
    %p39 = scmp.ne.s32.totalorder %s28, %s29
    %p40 = scmp.eq.s32.totalorder %s20, 0
    %p41 = por %p39, %p40
    %p42 = scmp.ne.s32.totalorder %s28, %s29
    %p43 = scmp.eq.s32.totalorder %s21, 1
    %p44 = por %p42, %p43
    %p46 = scmp.ne.s32.totalorder %s29, %s45
    %p47 = scmp.eq.s32.totalorder %s21, 0
    %p48 = por %p46, %p47
    %s50 = sadd.s32 %s49, 1
    %p53 = scmp.eq.s32.totalorder %s15, 1
    %p54 = scmp.ne.s32.totalorder %s49, %s51
    %p55 = scmp.eq.s32.totalorder %s15, 0
    %p56 = por %p54, %p55
    %p57 = scmp.ne.s32.totalorder %s49, %s51
    %p58 = scmp.eq.s32.totalorder %s20, 1
    %p59 = por %p57, %p58
    %p60 = scmp.ne.s32.totalorder %s51, %s52
    %p61 = scmp.eq.s32.totalorder %s20, 0
    %p62 = por %p60, %p61
    %p63 = scmp.ne.s32.totalorder %s51, %s52
    %p64 = scmp.eq.s32.totalorder %s21, 1
    %p65 = por %p63, %p64
    %p67 = scmp.ne.s32.totalorder %s52, %s66
    %p68 = scmp.eq.s32.totalorder %s21, 0
    %p69 = por %p67, %p68
    %s71 = sadd.s32 %s70, 1
    %p74 = scmp.eq.s32.totalorder %s15, 1
    %p75 = scmp.ne.s32.totalorder %s70, %s72
    %p76 = scmp.eq.s32.totalorder %s15, 0
    %p77 = por %p75, %p76
    %p78 = scmp.ne.s32.totalorder %s70, %s72
    %p79 = scmp.eq.s32.totalorder %s20, 1
    %p80 = por %p78, %p79
    %p81 = scmp.ne.s32.totalorder %s72, %s73
    %p82 = scmp.eq.s32.totalorder %s20, 0
    %p83 = por %p81, %p82
    %p84 = scmp.ne.s32.totalorder %s72, %s73
    %p85 = scmp.eq.s32.totalorder %s21, 1
    %p86 = por %p84, %p85
    %p88 = scmp.ne.s32.totalorder %s73, %s87
    %p89 = scmp.eq.s32.totalorder %s21, 0
    %p90 = por %p88, %p89
    %s92 = sadd.s32 %s91, 1
    %p95 = scmp.eq.s32.totalorder %s15, 1
    %p96 = scmp.ne.s32.totalorder %s91, %s93
    %p97 = scmp.eq.s32.totalorder %s15, 0
    %p98 = por %p96, %p97
    %p99 = scmp.ne.s32.totalorder %s91, %s93
    %p100 = scmp.eq.s32.totalorder %s20, 1
    %p101 = por %p99, %p100
    %p102 = scmp.ne.s32.totalorder %s93, %s94
    %p103 = scmp.eq.s32.totalorder %s20, 0
    %p104 = por %p102, %p103
    %p105 = scmp.ne.s32.totalorder %s93, %s94
    %p106 = scmp.eq.s32.totalorder %s21, 1
    %p107 = por %p105, %p106
    %p109 = scmp.ne.s32.totalorder %s94, %s108
    %p110 = scmp.eq.s32.totalorder %s21, 0
    %p111 = por %p109, %p110
    %s113 = sadd.s32 %s112, 1
    %p116 = scmp.eq.s32.totalorder %s15, 1
    %p117 = scmp.ne.s32.totalorder %s112, %s114
    %p118 = scmp.eq.s32.totalorder %s15, 0
    %p119 = por %p117, %p118
    %p120 = scmp.ne.s32.totalorder %s112, %s114
    %p121 = scmp.eq.s32.totalorder %s20, 1
    %p122 = por %p120, %p121
    %p123 = scmp.ne.s32.totalorder %s114, %s115
    %p124 = scmp.eq.s32.totalorder %s20, 0
    %p125 = por %p123, %p124
    %p126 = scmp.ne.s32.totalorder %s114, %s115
    %p127 = scmp.eq.s32.totalorder %s21, 1
    %p128 = por %p126, %p127
    %p130 = scmp.ne.s32.totalorder %s115, %s129
    %p131 = scmp.eq.s32.totalorder %s21, 0
    %p132 = por %p130, %p131
    %s134 = sadd.s32 %s133, 1
    %p137 = scmp.eq.s32.totalorder %s15, 1
    %p138 = scmp.ne.s32.totalorder %s133, %s135
    %p139 = scmp.eq.s32.totalorder %s15, 0
    %p140 = por %p138, %p139
    %p141 = scmp.ne.s32.totalorder %s133, %s135
    %p142 = scmp.eq.s32.totalorder %s20, 1
    %p143 = por %p141, %p142
    %p144 = scmp.ne.s32.totalorder %s135, %s136
    %p145 = scmp.eq.s32.totalorder %s20, 0
    %p146 = por %p144, %p145
    %p147 = scmp.ne.s32.totalorder %s135, %s136
    %p148 = scmp.eq.s32.totalorder %s21, 1
    %p149 = por %p147, %p148
    %p151 = scmp.ne.s32.totalorder %s136, %s150
    %p152 = scmp.eq.s32.totalorder %s21, 0
    %p153 = por %p151, %p152
    %s155 = sadd.s32 %s154, 1
    %p158 = scmp.eq.s32.totalorder %s15, 1
    %p159 = scmp.ne.s32.totalorder %s154, %s156
    %p160 = scmp.eq.s32.totalorder %s15, 0
    %p161 = por %p159, %p160
    %p162 = scmp.ne.s32.totalorder %s154, %s156
    %p163 = scmp.eq.s32.totalorder %s20, 1
    %p164 = por %p162, %p163
    %p165 = scmp.ne.s32.totalorder %s156, %s157
    %p166 = scmp.eq.s32.totalorder %s20, 0
    %p167 = por %p165, %p166
    %p168 = scmp.ne.s32.totalorder %s156, %s157
    %p169 = scmp.eq.s32.totalorder %s21, 1
    %p170 = por %p168, %p169
    %p172 = scmp.ne.s32.totalorder %s157, %s171
    %p173 = scmp.eq.s32.totalorder %s21, 0
    %p174 = por %p172, %p173
    %s176 = sadd.s32 %s175, 1
    %p179 = scmp.eq.s32.totalorder %s15, 1
    %p180 = scmp.ne.s32.totalorder %s175, %s177
    %p181 = scmp.eq.s32.totalorder %s15, 0
    %p182 = por %p180, %p181
    %p183 = scmp.ne.s32.totalorder %s175, %s177
    %p184 = scmp.eq.s32.totalorder %s20, 1
    %p185 = por %p183, %p184
    %p186 = scmp.ne.s32.totalorder %s177, %s178
    %p187 = scmp.eq.s32.totalorder %s20, 0
    %p188 = por %p186, %p187
    %p189 = scmp.ne.s32.totalorder %s177, %s178
    %p190 = scmp.eq.s32.totalorder %s21, 1
    %p191 = por %p189, %p190
    %p193 = scmp.ne.s32.totalorder %s178, %s192
    %p194 = scmp.eq.s32.totalorder %s21, 0
    %p195 = por %p193, %p194
    %s197 = sadd.s32 %s196, 1
    %p200 = scmp.eq.s32.totalorder %s15, 1
    %p201 = scmp.ne.s32.totalorder %s196, %s198
    %p202 = scmp.eq.s32.totalorder %s15, 0
    %p203 = por %p201, %p202
    %p204 = scmp.ne.s32.totalorder %s196, %s198
    %p205 = scmp.eq.s32.totalorder %s20, 1
    %p206 = por %p204, %p205
    %p207 = scmp.ne.s32.totalorder %s198, %s199
    %p208 = scmp.eq.s32.totalorder %s20, 0
    %p209 = por %p207, %p208
    %p210 = scmp.ne.s32.totalorder %s198, %s199
    %p211 = scmp.eq.s32.totalorder %s21, 1
    %p212 = por %p210, %p211
    %p214 = scmp.ne.s32.totalorder %s199, %s213
    %p215 = scmp.eq.s32.totalorder %s21, 0
    %p216 = por %p214, %p215
    %s217 = ssub.s32 %s15, %s22
    %p218 = scmp.eq.s32.totalorder %s217, 0
    %s220 = sadd.s32 %s219, 1
    %s221 = scalar_select %p218, %s219, %s220
    %p224 = pneg %p218
    %p225 = scmp.eq.s32.totalorder %s15, 1
    %p226 = por %p224, %p225
    %p227 = scmp.ne.s32.totalorder %s219, %s222
    %p228 = scmp.eq.s32.totalorder %s15, 0
    %p229 = por %p227, %p228
    %p230 = scmp.ne.s32.totalorder %s219, %s222
    %p231 = scmp.eq.s32.totalorder %s20, 1
    %p232 = por %p230, %p231
    %p233 = scmp.ne.s32.totalorder %s222, %s223
    %p234 = scmp.eq.s32.totalorder %s20, 0
    %p235 = por %p233, %p234
    %p236 = scmp.ne.s32.totalorder %s222, %s223
    %p237 = scmp.eq.s32.totalorder %s21, 1
    %p238 = por %p236, %p237
    %p240 = scmp.ne.s32.totalorder %s223, %s239
    %p241 = scmp.eq.s32.totalorder %s21, 0
    %p242 = por %p240, %p241
    %p243 = scmp.le.s32.totalorder 1, %s15
    %p244 = scmp.lt.s32.totalorder %s15, 3
    %p245 = pnand %p243, %p244
    %p246 = pneg %p245
    // Predicated region
    $region9: #{shared_net_forward.1} parent=5 // pred_check
      _
    $region10: #{shared_net_forward.1} parent=5 // pred_check_branch
      %248 = sbr.rel (%p245) target = $region12
    $region11: #{shared_net_forward.1} parent=5 // pred_region
      %s249 = ssub.s32 %s15, 1
      // Predicated region
      $region13: #{shared_net_forward.1} parent=11 // pred_check
        %p250 = pneg %p62
      $region14: #{shared_net_forward.1} parent=11 // pred_check_branch
        %252 = sbr.rel (%p250) target = $region16
      $region15: #{shared_net_forward.1} parent=11 // pred_region
        _
      $region16: #{shared_net_forward.1} parent=11 // pred_fallthru
        _
      // Predicated region
      $region17: #{shared_net_forward.1} parent=11 // pred_check
        %p253 = pneg %p83
      $region18: #{shared_net_forward.1} parent=11 // pred_check_branch
        %255 = sbr.rel (%p253) target = $region20
      $region19: #{shared_net_forward.1} parent=11 // pred_region
        _
      $region20: #{shared_net_forward.1} parent=11 // pred_fallthru
        _
      // Predicated region
      $region21: #{shared_net_forward.1} parent=11 // pred_check
        %p256 = pneg %p104
      $region22: #{shared_net_forward.1} parent=11 // pred_check_branch
        %258 = sbr.rel (%p256) target = $region24
      $region23: #{shared_net_forward.1} parent=11 // pred_region
        _
      $region24: #{shared_net_forward.1} parent=11 // pred_fallthru
        _
      // Predicated region
      $region25: #{shared_net_forward.1} parent=11 // pred_check
        %p259 = pneg %p125
      $region26: #{shared_net_forward.1} parent=11 // pred_check_branch
        %261 = sbr.rel (%p259) target = $region28
      $region27: #{shared_net_forward.1} parent=11 // pred_region
        _
      $region28: #{shared_net_forward.1} parent=11 // pred_fallthru
        _
      // Predicated region
      $region29: #{shared_net_forward.1} parent=11 // pred_check
        %p262 = pneg %p146
      $region30: #{shared_net_forward.1} parent=11 // pred_check_branch
        %264 = sbr.rel (%p262) target = $region32
      $region31: #{shared_net_forward.1} parent=11 // pred_region
        _
      $region32: #{shared_net_forward.1} parent=11 // pred_fallthru
        _
      // Predicated region
      $region33: #{shared_net_forward.1} parent=11 // pred_check
        %p265 = pneg %p167
      $region34: #{shared_net_forward.1} parent=11 // pred_check_branch
        %267 = sbr.rel (%p265) target = $region36
      $region35: #{shared_net_forward.1} parent=11 // pred_region
        _
      $region36: #{shared_net_forward.1} parent=11 // pred_fallthru
        _
      // Predicated region
      $region37: #{shared_net_forward.1} parent=11 // pred_check
        %p268 = pneg %p188
      $region38: #{shared_net_forward.1} parent=11 // pred_check_branch
        %270 = sbr.rel (%p268) target = $region40
      $region39: #{shared_net_forward.1} parent=11 // pred_region
        _
      $region40: #{shared_net_forward.1} parent=11 // pred_fallthru
        _
      // Predicated region
      $region41: #{shared_net_forward.1} parent=11 // pred_check
        %p271 = pneg %p209
      $region42: #{shared_net_forward.1} parent=11 // pred_check_branch
        %273 = sbr.rel (%p271) target = $region44
      $region43: #{shared_net_forward.1} parent=11 // pred_region
        _
      $region44: #{shared_net_forward.1} parent=11 // pred_fallthru
        _
    $region12: #{shared_net_forward.1} parent=5 // pred_fallthru
      _
    %p274 = scmp.lt.s32.totalorder %s15, 2
    // Predicated region
    $region45: #{shared_net_forward.1} parent=5 // pred_check
      %p275 = pneg %p274
    $region46: #{shared_net_forward.1} parent=5 // pred_check_branch
      %277 = sbr.rel (%p275) target = $region48
    $region47: #{shared_net_forward.1} parent=5 // pred_region
      // Predicated region
      $region49: #{shared_net_forward.1} parent=47 // pred_check
        %p278 = pneg %p35
      $region50: #{shared_net_forward.1} parent=47 // pred_check_branch
        %280 = sbr.rel (%p278) target = $region52
      $region51: #{shared_net_forward.1} parent=47 // pred_region
        %p281 = scmp.lt.s32.totalorder %s15, 1
        %s282 = scalar_select %p281, %s15, 1
        %s283 = smul.addr %s282, 16
        %s284 = smul.addr %s283, 4
        %s285 = scalar_lea.vmem %s0, %s284
      $region52: #{shared_net_forward.1} parent=47 // pred_fallthru
        _
    $region48: #{shared_net_forward.1} parent=5 // pred_fallthru
      _
    %p286 = scmp.le.s32.totalorder 1, %s15
    %p287 = scmp.lt.s32.totalorder %s15, 3
    %p288 = pnand %p286, %p287
    %p289 = pneg %p288
    // Predicated region
    $region53: #{shared_net_forward.1} parent=5 // pred_check
      _
    $region54: #{shared_net_forward.1} parent=5 // pred_check_branch
      %291 = sbr.rel (%p288) target = $region56
    $region55: #{shared_net_forward.1} parent=5 // pred_region
      %s292 = ssub.s32 %s15, 1
      %p293 = scmp.lt.s32.totalorder %s20, 1
      %s294 = scalar_select %p293, %s20, 1
      %s295 = smul.addr %s294, 16
      %s296 = smul.addr %s295, 4
      %s297 = scalar_lea.vmem %s0, %s296
      %p298 = pneg %p41
      %p299 = pneg %p38
      %p300 = pneg %p62
      %p301 = pneg %p59
      %p302 = pneg %p83
      %p303 = pneg %p80
      %p304 = pneg %p104
      %p305 = pneg %p101
      %p306 = pneg %p125
      %p307 = pneg %p122
      %p308 = pneg %p146
      %p309 = pneg %p143
      %p310 = pneg %p167
      %p311 = pneg %p164
      %p312 = pneg %p188
      %p313 = pneg %p185
      %p314 = pneg %p209
      %p315 = pneg %p206
      %p316 = pneg %p235
      %p317 = pneg %p232
      %p318 = scmp.lt.s32.totalorder %s20, 1
      %s319 = scalar_select %p318, %s20, 1
      %s320 = smul.addr %s319, 8
      %s321 = scalar_lea.vmem %s9, %s320
      %p322 = scmp.lt.s32.totalorder %s20, 1
      %s323 = scalar_select %p322, %s20, 1
      %s324 = smul.addr %s323, 16
      %s325 = smul.addr %s324, 4
      %s326 = scalar_lea.vmem %s0, %s325
      %p327 = scmp.lt.s32.totalorder %s20, 1
      %s328 = scalar_select %p327, %s20, 1
      %s329 = smul.addr %s328, 8
      %s330 = scalar_lea.vmem %s9, %s329
      %v332 = vld [vmem:[%s326] sm:$0xff]
      %v333 = vld [vmem:[%s326 + $0x8] sm:$0xff]
      %v334 = vld [vmem:[%s326 + $0x10] sm:$0xff]
      %v335 = vld [vmem:[%s326 + $0x18] sm:$0xff]
      %v336 = vld [vmem:[%s326 + $0x20] sm:$0xff]
      %v337 = vld [vmem:[%s326 + $0x28] sm:$0xff]
      %v338 = vld [vmem:[%s326 + $0x30] sm:$0xff]
      %v339 = vld [vmem:[%s326 + $0x38] sm:$0xff]
      %v340 = vld [vmem:[%s1] sm:$0xf]
      %v341 = vld [vmem:[%s1 + $0x4] sm:$0xf]
      %v342 = vld [vmem:[%s1 + $0x8] sm:$0xf]
      %v343 = vld [vmem:[%s1 + $0xc] sm:$0xf]
      %v344 = vld [vmem:[%s1 + $0x10] sm:$0xf]
      %v345 = vld [vmem:[%s1 + $0x14] sm:$0xf]
      %v346 = vld [vmem:[%s1 + $0x18] sm:$0xf]
      %v347 = vld [vmem:[%s1 + $0x1c] sm:$0xf]
      %v348 = vld [vmem:[%s1 + $0x20] sm:$0xf]
      %v349 = vld [vmem:[%s1 + $0x24] sm:$0xf]
      %v350 = vld [vmem:[%s1 + $0x28] sm:$0xf]
      %v351 = vld [vmem:[%s1 + $0x2c] sm:$0xf]
      %v352 = vld [vmem:[%s1 + $0x30] sm:$0xf]
      %v353 = vld [vmem:[%s1 + $0x34] sm:$0xf]
      %v354 = vld [vmem:[%s1 + $0x38] sm:$0xf]
      %v355 = vld [vmem:[%s1 + $0x3c] sm:$0xf]
      %v356 = vld [vmem:[%s1 + $0x40] sm:$0xf]
      %v357 = vld [vmem:[%s1 + $0x44] sm:$0xf]
      %v358 = vld [vmem:[%s1 + $0x48] sm:$0xf]
      %v359 = vld [vmem:[%s1 + $0x4c] sm:$0xf]
      %v360 = vld [vmem:[%s1 + $0x50] sm:$0xf]
      %v361 = vld [vmem:[%s1 + $0x54] sm:$0xf]
      %v362 = vld [vmem:[%s1 + $0x58] sm:$0xf]
      %v363 = vld [vmem:[%s1 + $0x5c] sm:$0xf]
      %v364 = vld [vmem:[%s1 + $0x60] sm:$0xf]
      %v365 = vld [vmem:[%s1 + $0x64] sm:$0xf]
      %v366 = vld [vmem:[%s1 + $0x68] sm:$0xf]
      %v367 = vld [vmem:[%s1 + $0x6c] sm:$0xf]
      %v368 = vld [vmem:[%s1 + $0x70] sm:$0xf]
      %v369 = vld [vmem:[%s1 + $0x74] sm:$0xf]
      %v370 = vld [vmem:[%s1 + $0x78] sm:$0xf]
      %v371 = vld [vmem:[%s1 + $0x7c] sm:$0xf]
      %v372 = vld [vmem:[%s2] sm:$0x1]
      %v374 = vlaneseq
      %v375 = vshrl.u32 %v374, 7
      %v376 = vsub.s32 0, %v375
      %v377 = vrot.slane %v372, %v376
      %v387 = vunpack.c.l.b16 %v332
      %v388 = vunpack.c.h.b16 %v332
      %v389 = vunpack.c.l.b16 %v333
      %v390 = vunpack.c.h.b16 %v333
      %v391 = vunpack.c.l.b16 %v334
      %v392 = vunpack.c.h.b16 %v334
      %v393 = vunpack.c.l.b16 %v335
      %v394 = vunpack.c.h.b16 %v335
      %v395 = vunpack.c.l.b16 %v336
      %v396 = vunpack.c.h.b16 %v336
      %v397 = vunpack.c.l.b16 %v337
      %v398 = vunpack.c.h.b16 %v337
      %v399 = vunpack.c.l.b16 %v338
      %v400 = vunpack.c.h.b16 %v338
      %v401 = vunpack.c.l.b16 %v339
      %v402 = vunpack.c.h.b16 %v339
      %v403 = vpack.c.b16 %v389, %v387
      %v404 = vpack.c.b16 %v390, %v388
      %v405 = vpack.c.b16 %v393, %v391
      %v406 = vpack.c.b16 %v394, %v392
      %v407 = vpack.c.b16 %v397, %v395
      %v408 = vpack.c.b16 %v398, %v396
      %v409 = vpack.c.b16 %v401, %v399
      %v410 = vpack.c.b16 %v402, %v400
      %v451 = vunpack.c.l.b16 %v340
      %v452 = vunpack.c.l.b16 %v341
      %v453 = vunpack.c.l.b16 %v342
      %v454 = vunpack.c.l.b16 %v343
      %v455 = vunpack.c.l.b16 %v344
      %v456 = vunpack.c.l.b16 %v345
      %v457 = vunpack.c.l.b16 %v346
      %v458 = vunpack.c.l.b16 %v347
      %v459 = vunpack.c.l.b16 %v348
      %v460 = vunpack.c.l.b16 %v349
      %v461 = vunpack.c.l.b16 %v350
      %v462 = vunpack.c.l.b16 %v351
      %v463 = vunpack.c.l.b16 %v352
      %v464 = vunpack.c.l.b16 %v353
      %v465 = vunpack.c.l.b16 %v354
      %v466 = vunpack.c.l.b16 %v355
      %v467 = vunpack.c.l.b16 %v356
      %v468 = vunpack.c.l.b16 %v357
      %v469 = vunpack.c.l.b16 %v358
      %v470 = vunpack.c.l.b16 %v359
      %v471 = vunpack.c.l.b16 %v360
      %v472 = vunpack.c.l.b16 %v361
      %v473 = vunpack.c.l.b16 %v362
      %v474 = vunpack.c.l.b16 %v363
      %v475 = vunpack.c.l.b16 %v364
      %v476 = vunpack.c.l.b16 %v365
      %v477 = vunpack.c.l.b16 %v366
      %v478 = vunpack.c.l.b16 %v367
      %v479 = vunpack.c.l.b16 %v368
      %v480 = vunpack.c.l.b16 %v369
      %v481 = vunpack.c.l.b16 %v370
      %v482 = vunpack.c.l.b16 %v371
      %v483 = vpack.c.b16 %v452, %v451
      %v484 = vpack.c.b16 %v454, %v453
      %v485 = vpack.c.b16 %v456, %v455
      %v486 = vpack.c.b16 %v458, %v457
      %v487 = vpack.c.b16 %v460, %v459
      %v488 = vpack.c.b16 %v462, %v461
      %v489 = vpack.c.b16 %v464, %v463
      %v490 = vpack.c.b16 %v466, %v465
      %v491 = vpack.c.b16 %v468, %v467
      %v492 = vpack.c.b16 %v470, %v469
      %v493 = vpack.c.b16 %v472, %v471
      %v494 = vpack.c.b16 %v474, %v473
      %v495 = vpack.c.b16 %v476, %v475
      %v496 = vpack.c.b16 %v478, %v477
      %v497 = vpack.c.b16 %v480, %v479
      %v498 = vpack.c.b16 %v482, %v481
      %515 = vmatprep.subr.bf16.mxu0 0
      %516 = vmatpush1.bf16.msra.mxu0 %v490
      %517 = vmatprep.subr.bf16.mxu0 0
      %518 = vmatpush1.bf16.msra.mxu0 %v489
      %519 = vmatprep.subr.bf16.mxu0 0
      %520 = vmatpush1.bf16.msra.mxu0 %v488
      %521 = vmatprep.subr.bf16.mxu0 0
      %522 = vmatpush1.bf16.msra.mxu0 %v487
      %523 = vmatprep.subr.bf16.mxu0 0
      %524 = vmatpush1.bf16.msra.mxu0 %v486
      %525 = vmatprep.subr.bf16.mxu0 0
      %526 = vmatpush1.bf16.msra.mxu0 %v485
      %527 = vmatprep.subr.bf16.mxu0 0
      %528 = vmatpush1.bf16.msra.mxu0 %v484
      %529 = vmatprep.subr.bf16.mxu0 0
      %530 = vmatpush1.bf16.msra.mxu0 %v483
      %531 = vmatprep.subr.bf16.mxu0 0
      %532 = vmatpush2.bf16.msra.mxu0 %v498
      %533 = vmatprep.subr.bf16.mxu0 0
      %534 = vmatpush2.bf16.msra.mxu0 %v497
      %535 = vmatprep.subr.bf16.mxu0 0
      %536 = vmatpush2.bf16.msra.mxu0 %v496
      %537 = vmatprep.subr.bf16.mxu0 0
      %538 = vmatpush2.bf16.msra.mxu0 %v495
      %539 = vmatprep.subr.bf16.mxu0 0
      %540 = vmatpush2.bf16.msra.mxu0 %v494
      %541 = vmatprep.subr.bf16.mxu0 0
      %542 = vmatpush2.bf16.msra.mxu0 %v493
      %543 = vmatprep.subr.bf16.mxu0 0
      %544 = vmatpush2.bf16.msra.mxu0 %v492
      %545 = vmatprep.subr.bf16.mxu0 0
      %546 = vmatpush2.bf16.msra.mxu0 %v491
      %547 = vmatprep.mubr.bf16.mxu0 %v404
      %548 = vmatmul.mubr.bf16.gmra.mxu0 %v403
      %v549 = vpop.f32.mrf.mxu0
      %v550 = vadd.f32 %v377, %v549
      %v551 = vpop.f32.mrf.mxu0
      %v552 = vpop.f32.mrf.mxu0
      %v553 = vadd.f32 %v377, %v552
      %v554 = vpop.f32.mrf.mxu0
      %555 = vmatprep.mubr.bf16.mxu0 %v406
      %556 = vmatmul.mubr.bf16.gmra.mxu0 %v405
      %v557 = vpop.f32.mrf.mxu0
      %v558 = vadd.f32 %v377, %v557
      %v559 = vpop.f32.mrf.mxu0
      %v560 = vpop.f32.mrf.mxu0
      %v561 = vadd.f32 %v377, %v560
      %v562 = vpop.f32.mrf.mxu0
      %563 = vmatprep.mubr.bf16.mxu0 %v408
      %564 = vmatmul.mubr.bf16.gmra.mxu0 %v407
      %v565 = vpop.f32.mrf.mxu0
      %v566 = vadd.f32 %v377, %v565
      %v567 = vpop.f32.mrf.mxu0
      %v568 = vpop.f32.mrf.mxu0
      %v569 = vadd.f32 %v377, %v568
      %v570 = vpop.f32.mrf.mxu0
      %571 = vmatprep.mubr.bf16.mxu0 %v410
      %572 = vmatmul.mubr.bf16.gmra.mxu0 %v409
      %v573 = vpop.f32.mrf.mxu0
      %v574 = vadd.f32 %v377, %v573
      %v575 = vpop.f32.mrf.mxu0
      %v576 = vpop.f32.mrf.mxu0
      %v577 = vadd.f32 %v377, %v576
      %v578 = vpop.f32.mrf.mxu0
      %579 = vdwg.mxu0
      %v580 = vmax.f32 %v550, 0.0
      %v581 = vmax.f32 %v553, 0.0
      %v582 = vmax.f32 %v558, 0.0
      %v583 = vmax.f32 %v561, 0.0
      %v584 = vmax.f32 %v566, 0.0
      %v585 = vmax.f32 %v569, 0.0
      %v586 = vmax.f32 %v574, 0.0
      %v587 = vmax.f32 %v577, 0.0
      %v588 = vpack.c.bf16 %v581, %v580
      %v589 = vpack.c.bf16 %v583, %v582
      %v590 = vpack.c.bf16 %v585, %v584
      %v591 = vpack.c.bf16 %v587, %v586
      %v592 = vld [vmem:[%s3] sm:$0xf]
      %v593 = vld [vmem:[%s3 + $0x4] sm:$0xf]
      %v594 = vld [vmem:[%s3 + $0x8] sm:$0xf]
      %v595 = vld [vmem:[%s3 + $0xc] sm:$0xf]
      %v596 = vld [vmem:[%s3 + $0x10] sm:$0xf]
      %v597 = vld [vmem:[%s3 + $0x14] sm:$0xf]
      %v598 = vld [vmem:[%s3 + $0x18] sm:$0xf]
      %v599 = vld [vmem:[%s3 + $0x1c] sm:$0xf]
      %v600 = vld [vmem:[%s3 + $0x20] sm:$0xf]
      %v601 = vld [vmem:[%s3 + $0x24] sm:$0xf]
      %v602 = vld [vmem:[%s3 + $0x28] sm:$0xf]
      %v603 = vld [vmem:[%s3 + $0x2c] sm:$0xf]
      %v604 = vld [vmem:[%s3 + $0x30] sm:$0xf]
      %v605 = vld [vmem:[%s3 + $0x34] sm:$0xf]
      %v606 = vld [vmem:[%s3 + $0x38] sm:$0xf]
      %v607 = vld [vmem:[%s3 + $0x3c] sm:$0xf]
      %v608 = vld [vmem:[%s3 + $0x40] sm:$0xf]
      %v609 = vld [vmem:[%s3 + $0x44] sm:$0xf]
      %v628 = vunpack.c.l.b16 %v592
      %v629 = vunpack.c.l.b16 %v593
      %v630 = vunpack.c.l.b16 %v594
      %v631 = vunpack.c.l.b16 %v595
      %v632 = vunpack.c.l.b16 %v596
      %v633 = vunpack.c.l.b16 %v597
      %v634 = vunpack.c.l.b16 %v598
      %v635 = vunpack.c.l.b16 %v599
      %v636 = vunpack.c.l.b16 %v600
      %v637 = vunpack.c.l.b16 %v601
      %v638 = vunpack.c.l.b16 %v602
      %v639 = vunpack.c.l.b16 %v603
      %v640 = vunpack.c.l.b16 %v604
      %v641 = vunpack.c.l.b16 %v605
      %v642 = vunpack.c.l.b16 %v606
      %v643 = vunpack.c.l.b16 %v607
      %v644 = vunpack.c.l.b16 %v608
      %v645 = vunpack.c.l.b16 %v609
      %v646 = vpack.c.b16 %v629, %v628
      %v647 = vpack.c.b16 %v631, %v630
      %v648 = vpack.c.b16 %v633, %v632
      %v649 = vpack.c.b16 %v635, %v634
      %v650 = vpack.c.b16 %v637, %v636
      %v651 = vpack.c.b16 %v639, %v638
      %v652 = vpack.c.b16 %v641, %v640
      %v653 = vpack.c.b16 %v643, %v642
      %v654 = vpack.c.b16 %v645, %v644
      %vm655 = vcmask 523264
      %v657 = vsel %vm655, %v646, 0
      %v660 = vsel %vm655, %v647, 0
      %v663 = vsel %vm655, %v648, 0
      %v666 = vsel %vm655, %v649, 0
      %v669 = vsel %vm655, %v650, 0
      %v672 = vsel %vm655, %v651, 0
      %v675 = vsel %vm655, %v652, 0
      %v678 = vsel %vm655, %v653, 0
      %v681 = vsel %vm655, %v654, 0
      %683 = vmatprep.subr.bf16.mxu0 0
      %684 = vmatpush1.bf16.msra.mxu0 0
      %685 = vmatprep.subr.bf16.mxu0 0
      %686 = vmatpush1.bf16.msra.mxu0 0
      %687 = vmatprep.subr.bf16.mxu0 0
      %688 = vmatpush1.bf16.msra.mxu0 0
      %689 = vmatprep.subr.bf16.mxu0 0
      %690 = vmatpush1.bf16.msra.mxu0 0
      %691 = vmatprep.subr.bf16.mxu0 0
      %692 = vmatpush1.bf16.msra.mxu0 %v591
      %693 = vmatprep.subr.bf16.mxu0 0
      %694 = vmatpush1.bf16.msra.mxu0 %v590
      %695 = vmatprep.subr.bf16.mxu0 0
      %696 = vmatpush1.bf16.msra.mxu0 %v589
      %697 = vmatprep.subr.bf16.mxu0 0
      %698 = vmatpush1.bf16.msra.mxu0 %v588
      %699 = vmatprep.subr.bf16.mxu0 0
      %700 = vmatpush2.bf16.msra.mxu0 0
      %701 = vmatprep.subr.bf16.mxu0 0
      %702 = vmatpush2.bf16.msra.mxu0 0
      %703 = vmatprep.subr.bf16.mxu0 0
      %704 = vmatpush2.bf16.msra.mxu0 0
      %705 = vmatprep.subr.bf16.mxu0 0
      %706 = vmatpush2.bf16.msra.mxu0 0
      %707 = vmatprep.subr.bf16.mxu0 0
      %708 = vmatpush2.bf16.msra.mxu0 0
      %709 = vmatprep.subr.bf16.mxu0 0
      %710 = vmatpush2.bf16.msra.mxu0 0
      %711 = vmatprep.subr.bf16.mxu0 0
      %712 = vmatpush2.bf16.msra.mxu0 0
      %713 = vmatprep.subr.bf16.mxu0 0
      %714 = vmatpush2.bf16.msra.mxu0 0
      %715 = vmatprep.mubr.bf16.mxu0 0
      %716 = vmatmul.mubr.bf16.gmra.mxu0 %v657
      %v717 = vpop.f32.mrf.mxu0
      %v718 = vadd.f32 0.0, %v717
      %v719 = vpop.f32.mrf.mxu0
      %v720 = vpop.f32.mrf.mxu0
      %v721 = vadd.f32 0.0, %v720
      %v722 = vpop.f32.mrf.mxu0
      %723 = vmatprep.mubr.bf16.mxu0 0
      %724 = vmatmul.mubr.bf16.gmra.mxu0 %v660
      %v725 = vpop.f32.mrf.mxu0
      %v726 = vadd.f32 0.0, %v725
      %v727 = vpop.f32.mrf.mxu0
      %v728 = vpop.f32.mrf.mxu0
      %v729 = vadd.f32 0.0, %v728
      %v730 = vpop.f32.mrf.mxu0
      %731 = vmatprep.mubr.bf16.mxu0 0
      %732 = vmatmul.mubr.bf16.gmra.mxu0 %v663
      %v733 = vpop.f32.mrf.mxu0
      %v734 = vadd.f32 0.0, %v733
      %v735 = vpop.f32.mrf.mxu0
      %v736 = vpop.f32.mrf.mxu0
      %v737 = vadd.f32 0.0, %v736
      %v738 = vpop.f32.mrf.mxu0
      %739 = vmatprep.mubr.bf16.mxu0 0
      %740 = vmatmul.mubr.bf16.gmra.mxu0 %v666
      %v741 = vpop.f32.mrf.mxu0
      %v742 = vadd.f32 0.0, %v741
      %v743 = vpop.f32.mrf.mxu0
      %v744 = vpop.f32.mrf.mxu0
      %v745 = vadd.f32 0.0, %v744
      %v746 = vpop.f32.mrf.mxu0
      %747 = vmatprep.mubr.bf16.mxu0 0
      %748 = vmatmul.mubr.bf16.gmra.mxu0 %v669
      %v749 = vpop.f32.mrf.mxu0
      %v750 = vadd.f32 0.0, %v749
      %v751 = vpop.f32.mrf.mxu0
      %v752 = vpop.f32.mrf.mxu0
      %v753 = vadd.f32 0.0, %v752
      %v754 = vpop.f32.mrf.mxu0
      %755 = vmatprep.mubr.bf16.mxu0 0
      %756 = vmatmul.mubr.bf16.gmra.mxu0 %v672
      %v757 = vpop.f32.mrf.mxu0
      %v758 = vadd.f32 0.0, %v757
      %v759 = vpop.f32.mrf.mxu0
      %v760 = vpop.f32.mrf.mxu0
      %v761 = vadd.f32 0.0, %v760
      %v762 = vpop.f32.mrf.mxu0
      %763 = vmatprep.mubr.bf16.mxu0 0
      %764 = vmatmul.mubr.bf16.gmra.mxu0 %v675
      %v765 = vpop.f32.mrf.mxu0
      %v766 = vadd.f32 0.0, %v765
      %v767 = vpop.f32.mrf.mxu0
      %v768 = vpop.f32.mrf.mxu0
      %v769 = vadd.f32 0.0, %v768
      %v770 = vpop.f32.mrf.mxu0
      %771 = vmatprep.mubr.bf16.mxu0 0
      %772 = vmatmul.mubr.bf16.gmra.mxu0 %v678
      %v773 = vpop.f32.mrf.mxu0
      %v774 = vadd.f32 0.0, %v773
      %v775 = vpop.f32.mrf.mxu0
      %v776 = vpop.f32.mrf.mxu0
      %v777 = vadd.f32 0.0, %v776
      %v778 = vpop.f32.mrf.mxu0
      %779 = vmatprep.mubr.bf16.mxu0 0
      %780 = vmatmul.mubr.bf16.gmra.mxu0 %v681
      %v781 = vpop.f32.mrf.mxu0
      %v782 = vadd.f32 0.0, %v781
      %v783 = vpop.f32.mrf.mxu0
      %v784 = vpop.f32.mrf.mxu0
      %v785 = vadd.f32 0.0, %v784
      %v786 = vpop.f32.mrf.mxu0
      %787 = vdwg.mxu0
      %vm788 = vcmask 261120
      %789 = vst.msk [vmem:[#allocation2] sm:$0xff] %vm788, %v718
      %790 = vst.msk [vmem:[#allocation2 + $0x18] sm:$0xff] %vm788, %v721
      %793 = vrot.lane.b32.xlu0 %v726, 32
      %v794 = vpop.permute.xlu0 %793
      %795 = vrot.lane.b32.xlu0 %v729, 32
      %v796 = vpop.permute.xlu0 %795
      %vm799 = vcmask 523520
      %800 = vst.msk [vmem:[#allocation2] sm:$0xff] %vm799, %v794
      %801 = vst.msk [vmem:[#allocation2 + $0x18] sm:$0xff] %vm799, %v796
      %804 = vrot.lane.b32.xlu0 %v734, 64
      %v805 = vpop.permute.xlu0 %804
      %806 = vrot.lane.b32.xlu0 %v737, 64
      %v807 = vpop.permute.xlu0 %806
      %vm810 = vcmask 785920
      %811 = vst.msk [vmem:[#allocation2] sm:$0xff] %vm810, %v805
      %812 = vst.msk [vmem:[#allocation2 + $0x18] sm:$0xff] %vm810, %v807
      %815 = vrot.lane.b32.xlu0 %v742, 96
      %v816 = vpop.permute.xlu0 %815
      %817 = vrot.lane.b32.xlu0 %v745, 96
      %v818 = vpop.permute.xlu0 %817
      %vm821 = vcmask 1048320
      %822 = vst.msk [vmem:[#allocation2] sm:$0xff] %vm821, %v816
      %823 = vst.msk [vmem:[#allocation2 + $0x18] sm:$0xff] %vm821, %v818
      %824 = vst.msk [vmem:[#allocation2 + $0x8] sm:$0xff] %vm788, %v750
      %825 = vst.msk [vmem:[#allocation2 + $0x20] sm:$0xff] %vm788, %v753
      %828 = vrot.lane.b32.xlu0 %v758, 32
      %v829 = vpop.permute.xlu0 %828
      %830 = vrot.lane.b32.xlu0 %v761, 32
      %v831 = vpop.permute.xlu0 %830
      %834 = vst.msk [vmem:[#allocation2 + $0x8] sm:$0xff] %vm799, %v829
      %835 = vst.msk [vmem:[#allocation2 + $0x20] sm:$0xff] %vm799, %v831
      %838 = vrot.lane.b32.xlu0 %v766, 64
      %v839 = vpop.permute.xlu0 %838
      %840 = vrot.lane.b32.xlu0 %v769, 64
      %v841 = vpop.permute.xlu0 %840
      %844 = vst.msk [vmem:[#allocation2 + $0x8] sm:$0xff] %vm810, %v839
      %845 = vst.msk [vmem:[#allocation2 + $0x20] sm:$0xff] %vm810, %v841
      %848 = vrot.lane.b32.xlu0 %v774, 96
      %v849 = vpop.permute.xlu0 %848
      %850 = vrot.lane.b32.xlu0 %v777, 96
      %v851 = vpop.permute.xlu0 %850
      %854 = vst.msk [vmem:[#allocation2 + $0x8] sm:$0xff] %vm821, %v849
      %855 = vst.msk [vmem:[#allocation2 + $0x20] sm:$0xff] %vm821, %v851
      %856 = vst.msk [vmem:[#allocation2 + $0x10] sm:$0xff] %vm788, %v782
      %857 = vst.msk [vmem:[#allocation2 + $0x28] sm:$0xff] %vm788, %v785
      %v858 = vld [vmem:[#allocation2] sm:$0xff]
      %v859 = vld [vmem:[#allocation2 + $0x8] sm:$0xff]
      %v860 = vld [vmem:[#allocation2 + $0x10] sm:$0xff]
      %v861 = vld [vmem:[#allocation2 + $0x18] sm:$0xff]
      %v862 = vld [vmem:[#allocation2 + $0x20] sm:$0xff]
      %v863 = vld [vmem:[#allocation2 + $0x28] sm:$0xff]
      %v864 = vpack.c.bf16 %v861, %v858
      %v865 = vpack.c.bf16 %v862, %v859
      %v866 = vpack.c.bf16 %v863, %v860
      %v867 = vld [vmem:[%s4] sm:$0xf]
      %v868 = vld [vmem:[%s4 + $0x4] sm:$0xf]
      %v869 = vld [vmem:[%s4 + $0x8] sm:$0xf]
      %v870 = vld [vmem:[%s4 + $0xc] sm:$0xf]
      %v871 = vld [vmem:[%s4 + $0x10] sm:$0xf]
      %v872 = vld [vmem:[%s4 + $0x14] sm:$0xf]
      %v873 = vld [vmem:[%s4 + $0x18] sm:$0xf]
      %v874 = vld [vmem:[%s4 + $0x1c] sm:$0xf]
      %v875 = vld [vmem:[%s4 + $0x20] sm:$0xf]
      %v876 = vld [vmem:[%s4 + $0x24] sm:$0xf]
      %v877 = vld [vmem:[%s4 + $0x28] sm:$0xf]
      %v878 = vld [vmem:[%s4 + $0x2c] sm:$0xf]
      %v879 = vld [vmem:[%s4 + $0x30] sm:$0xf]
      %v880 = vld [vmem:[%s4 + $0x34] sm:$0xf]
      %v881 = vld [vmem:[%s4 + $0x38] sm:$0xf]
      %v882 = vld [vmem:[%s4 + $0x3c] sm:$0xf]
      %v883 = vld [vmem:[%s4 + $0x40] sm:$0xf]
      %v884 = vld [vmem:[%s4 + $0x44] sm:$0xf]
      %v885 = vld [vmem:[%s4 + $0x48] sm:$0xf]
      %v886 = vld [vmem:[%s4 + $0x4c] sm:$0xf]
      %v887 = vld [vmem:[%s4 + $0x50] sm:$0xf]
      %v888 = vld [vmem:[%s4 + $0x54] sm:$0xf]
      %v889 = vld [vmem:[%s4 + $0x58] sm:$0xf]
      %v890 = vld [vmem:[%s4 + $0x5c] sm:$0xf]
      %v891 = vld [vmem:[%s4 + $0x60] sm:$0xf]
      %v892 = vld [vmem:[%s4 + $0x64] sm:$0xf]
      %v893 = vld [vmem:[%s4 + $0x68] sm:$0xf]
      %v894 = vld [vmem:[%s4 + $0x6c] sm:$0xf]
      %v895 = vld [vmem:[%s4 + $0x70] sm:$0xf]
      %v896 = vld [vmem:[%s4 + $0x74] sm:$0xf]
      %v897 = vld [vmem:[%s4 + $0x78] sm:$0xf]
      %v898 = vld [vmem:[%s4 + $0x7c] sm:$0xf]
      %v899 = vld [vmem:[%s4 + $0x80] sm:$0xf]
      %v900 = vld [vmem:[%s4 + $0x84] sm:$0xf]
      %v901 = vld [vmem:[%s4 + $0x88] sm:$0xf]
      %v902 = vld [vmem:[%s4 + $0x8c] sm:$0xf]
      %v903 = vld [vmem:[%s5] sm:$0x1]
      %v905 = vlaneseq
      %v906 = vshrl.u32 %v905, 7
      %v907 = vsub.s32 0, %v906
      %v908 = vrot.slane %v903, %v907
      %v946 = vunpack.c.l.b16 %v867
      %v947 = vunpack.c.l.b16 %v868
      %v948 = vunpack.c.l.b16 %v869
      %v949 = vunpack.c.l.b16 %v870
      %v950 = vunpack.c.l.b16 %v871
      %v951 = vunpack.c.l.b16 %v872
      %v952 = vunpack.c.l.b16 %v873
      %v953 = vunpack.c.l.b16 %v874
      %v954 = vunpack.c.l.b16 %v875
      %v955 = vunpack.c.l.b16 %v876
      %v956 = vunpack.c.l.b16 %v877
      %v957 = vunpack.c.l.b16 %v878
      %v958 = vunpack.c.l.b16 %v879
      %v959 = vunpack.c.l.b16 %v880
      %v960 = vunpack.c.l.b16 %v881
      %v961 = vunpack.c.l.b16 %v882
      %v962 = vunpack.c.l.b16 %v883
      %v963 = vunpack.c.l.b16 %v884
      %v964 = vunpack.c.l.b16 %v885
      %v965 = vunpack.c.l.b16 %v886
      %v966 = vunpack.c.l.b16 %v887
      %v967 = vunpack.c.l.b16 %v888
      %v968 = vunpack.c.l.b16 %v889
      %v969 = vunpack.c.l.b16 %v890
      %v970 = vunpack.c.l.b16 %v891
      %v971 = vunpack.c.l.b16 %v892
      %v972 = vunpack.c.l.b16 %v893
      %v973 = vunpack.c.l.b16 %v894
      %v974 = vunpack.c.l.b16 %v895
      %v975 = vunpack.c.l.b16 %v896
      %v976 = vunpack.c.l.b16 %v897
      %v977 = vunpack.c.l.b16 %v898
      %v978 = vunpack.c.l.b16 %v899
      %v979 = vunpack.c.l.b16 %v900
      %v980 = vunpack.c.l.b16 %v901
      %v981 = vunpack.c.l.b16 %v902
      %v982 = vpack.c.b16 %v947, %v946
      %v983 = vpack.c.b16 %v949, %v948
      %v984 = vpack.c.b16 %v951, %v950
      %v985 = vpack.c.b16 %v953, %v952
      %v986 = vpack.c.b16 %v955, %v954
      %v987 = vpack.c.b16 %v957, %v956
      %v988 = vpack.c.b16 %v959, %v958
      %v989 = vpack.c.b16 %v961, %v960
      %v990 = vpack.c.b16 %v963, %v962
      %v991 = vpack.c.b16 %v965, %v964
      %v992 = vpack.c.b16 %v967, %v966
      %v993 = vpack.c.b16 %v969, %v968
      %v994 = vpack.c.b16 %v971, %v970
      %v995 = vpack.c.b16 %v973, %v972
      %v996 = vpack.c.b16 %v975, %v974
      %v997 = vpack.c.b16 %v977, %v976
      %v998 = vpack.c.b16 %v979, %v978
      %v999 = vpack.c.b16 %v981, %v980
      %v1019 = vsel %vm788, %v866, 0
      %1021 = vmatprep.subr.bf16.mxu0 0
      %1022 = vmatpush1.bf16.msra.mxu0 %v989
      %1023 = vmatprep.subr.bf16.mxu0 0
      %1024 = vmatpush1.bf16.msra.mxu0 %v988
      %1025 = vmatprep.subr.bf16.mxu0 0
      %1026 = vmatpush1.bf16.msra.mxu0 %v987
      %1027 = vmatprep.subr.bf16.mxu0 0
      %1028 = vmatpush1.bf16.msra.mxu0 %v986
      %1029 = vmatprep.subr.bf16.mxu0 0
      %1030 = vmatpush1.bf16.msra.mxu0 %v985
      %1031 = vmatprep.subr.bf16.mxu0 0
      %1032 = vmatpush1.bf16.msra.mxu0 %v984
      %1033 = vmatprep.subr.bf16.mxu0 0
      %1034 = vmatpush1.bf16.msra.mxu0 %v983
      %1035 = vmatprep.subr.bf16.mxu0 0
      %1036 = vmatpush1.bf16.msra.mxu0 %v982
      %1037 = vmatprep.subr.bf16.mxu0 0
      %1038 = vmatpush2.bf16.msra.mxu0 %v997
      %1039 = vmatprep.subr.bf16.mxu0 0
      %1040 = vmatpush2.bf16.msra.mxu0 %v996
      %1041 = vmatprep.subr.bf16.mxu0 0
      %1042 = vmatpush2.bf16.msra.mxu0 %v995
      %1043 = vmatprep.subr.bf16.mxu0 0
      %1044 = vmatpush2.bf16.msra.mxu0 %v994
      %1045 = vmatprep.subr.bf16.mxu0 0
      %1046 = vmatpush2.bf16.msra.mxu0 %v993
      %1047 = vmatprep.subr.bf16.mxu0 0
      %1048 = vmatpush2.bf16.msra.mxu0 %v992
      %1049 = vmatprep.subr.bf16.mxu0 0
      %1050 = vmatpush2.bf16.msra.mxu0 %v991
      %1051 = vmatprep.subr.bf16.mxu0 0
      %1052 = vmatpush2.bf16.msra.mxu0 %v990
      %1053 = vmatprep.mubr.bf16.mxu0 %v865
      %1054 = vmatmul.mubr.bf16.gmra.mxu0 %v864
      %v1055 = vpop.f32.mrf.mxu0
      %v1056 = vadd.f32 %v908, %v1055
      %v1057 = vpop.f32.mrf.mxu0
      %v1058 = vpop.f32.mrf.mxu0
      %v1059 = vadd.f32 %v908, %v1058
      %v1060 = vpop.f32.mrf.mxu0
      %1061 = vdwg.mxu0
      %1062 = vmatprep.subr.bf16.mxu0 0
      %1063 = vmatpush1.bf16.msra.mxu0 0
      %1064 = vmatprep.subr.bf16.mxu0 0
      %1065 = vmatpush1.bf16.msra.mxu0 0
      %1066 = vmatprep.subr.bf16.mxu0 0
      %1067 = vmatpush1.bf16.msra.mxu0 0
      %1068 = vmatprep.subr.bf16.mxu0 0
      %1069 = vmatpush1.bf16.msra.mxu0 0
      %1070 = vmatprep.subr.bf16.mxu0 0
      %1071 = vmatpush1.bf16.msra.mxu0 0
      %1072 = vmatprep.subr.bf16.mxu0 0
      %1073 = vmatpush1.bf16.msra.mxu0 0
      %1074 = vmatprep.subr.bf16.mxu0 0
      %1075 = vmatpush1.bf16.msra.mxu0 %v999
      %1076 = vmatprep.subr.bf16.mxu0 0
      %1077 = vmatpush1.bf16.msra.mxu0 %v998
      %1078 = vmatprep.subr.bf16.mxu0 0
      %1079 = vmatpush2.bf16.msra.mxu0 0
      %1080 = vmatprep.subr.bf16.mxu0 0
      %1081 = vmatpush2.bf16.msra.mxu0 0
      %1082 = vmatprep.subr.bf16.mxu0 0
      %1083 = vmatpush2.bf16.msra.mxu0 0
      %1084 = vmatprep.subr.bf16.mxu0 0
      %1085 = vmatpush2.bf16.msra.mxu0 0
      %1086 = vmatprep.subr.bf16.mxu0 0
      %1087 = vmatpush2.bf16.msra.mxu0 0
      %1088 = vmatprep.subr.bf16.mxu0 0
      %1089 = vmatpush2.bf16.msra.mxu0 0
      %1090 = vmatprep.subr.bf16.mxu0 0
      %1091 = vmatpush2.bf16.msra.mxu0 0
      %1092 = vmatprep.subr.bf16.mxu0 0
      %1093 = vmatpush2.bf16.msra.mxu0 0
      %1094 = vmatprep.mubr.bf16.mxu0 0
      %1095 = vmatmul.mubr.bf16.gmra.mxu0 %v1019
      %v1096 = vpop.f32.mrf.mxu0
      %v1097 = vadd.f32 %v1056, %v1096
      %v1098 = vpop.f32.mrf.mxu0
      %v1099 = vpop.f32.mrf.mxu0
      %v1100 = vadd.f32 %v1059, %v1099
      %v1101 = vpop.f32.mrf.mxu0
      %1102 = vdwg.mxu0
      %v1103 = vmax.f32 %v1097, 0.0
      %v1104 = vmax.f32 %v1100, 0.0
      %v1105 = vpack.c.bf16 %v1104, %v1103
      %v1106 = vld [vmem:[%s6] sm:$0xf]
      %v1107 = vld [vmem:[%s6 + $0x4] sm:$0xf]
      %v1108 = vld [vmem:[%s6 + $0x8] sm:$0xf]
      %v1109 = vld [vmem:[%s6 + $0xc] sm:$0xf]
      %v1110 = vld [vmem:[%s6 + $0x10] sm:$0xf]
      %v1111 = vld [vmem:[%s6 + $0x14] sm:$0xf]
      %v1112 = vld [vmem:[%s6 + $0x18] sm:$0xf]
      %v1113 = vld [vmem:[%s6 + $0x1c] sm:$0xf]
      %v1114 = vld [vmem:[%s6 + $0x20] sm:$0xf]
      %v1124 = vunpack.c.l.b16 %v1106
      %v1125 = vunpack.c.l.b16 %v1107
      %v1126 = vunpack.c.l.b16 %v1108
      %v1127 = vunpack.c.l.b16 %v1109
      %v1128 = vunpack.c.l.b16 %v1110
      %v1129 = vunpack.c.l.b16 %v1111
      %v1130 = vunpack.c.l.b16 %v1112
      %v1131 = vunpack.c.l.b16 %v1113
      %v1132 = vunpack.c.l.b16 %v1114
      %v1133 = vpack.c.b16 %v1125, %v1124
      %v1134 = vpack.c.b16 %v1127, %v1126
      %v1135 = vpack.c.b16 %v1129, %v1128
      %v1136 = vpack.c.b16 %v1131, %v1130
      %v1137 = vpack.c.b16 %v1132, %v1132
      %vm1138 = vcmask 130048
      %v1140 = vsel %vm1138, %v1133, 0
      %v1143 = vsel %vm1138, %v1134, 0
      %v1146 = vsel %vm1138, %v1135, 0
      %v1149 = vsel %vm1138, %v1136, 0
      %v1152 = vsel %vm1138, %v1137, 0
      %1154 = vmatprep.subr.bf16.mxu0 0
      %1155 = vmatpush1.bf16.msra.mxu0 0
      %1156 = vmatprep.subr.bf16.mxu0 0
      %1157 = vmatpush1.bf16.msra.mxu0 0
      %1158 = vmatprep.subr.bf16.mxu0 0
      %1159 = vmatpush1.bf16.msra.mxu0 0
      %1160 = vmatprep.subr.bf16.mxu0 0
      %1161 = vmatpush1.bf16.msra.mxu0 0
      %1162 = vmatprep.subr.bf16.mxu0 0
      %1163 = vmatpush1.bf16.msra.mxu0 0
      %1164 = vmatprep.subr.bf16.mxu0 0
      %1165 = vmatpush1.bf16.msra.mxu0 0
      %1166 = vmatprep.subr.bf16.mxu0 0
      %1167 = vmatpush1.bf16.msra.mxu0 0
      %1168 = vmatprep.subr.bf16.mxu0 0
      %1169 = vmatpush1.bf16.msra.mxu0 %v1105
      %1170 = vmatprep.subr.bf16.mxu0 0
      %1171 = vmatpush2.bf16.msra.mxu0 0
      %1172 = vmatprep.subr.bf16.mxu0 0
      %1173 = vmatpush2.bf16.msra.mxu0 0
      %1174 = vmatprep.subr.bf16.mxu0 0
      %1175 = vmatpush2.bf16.msra.mxu0 0
      %1176 = vmatprep.subr.bf16.mxu0 0
      %1177 = vmatpush2.bf16.msra.mxu0 0
      %1178 = vmatprep.subr.bf16.mxu0 0
      %1179 = vmatpush2.bf16.msra.mxu0 0
      %1180 = vmatprep.subr.bf16.mxu0 0
      %1181 = vmatpush2.bf16.msra.mxu0 0
      %1182 = vmatprep.subr.bf16.mxu0 0
      %1183 = vmatpush2.bf16.msra.mxu0 0
      %1184 = vmatprep.subr.bf16.mxu0 0
      %1185 = vmatpush2.bf16.msra.mxu0 0
      %1186 = vmatprep.mubr.bf16.mxu0 0
      %1187 = vmatmul.mubr.bf16.gmra.mxu0 %v1140
      %v1188 = vpop.f32.mrf.mxu0
      %v1189 = vadd.f32 0.0, %v1188
      %v1190 = vpop.f32.mrf.mxu0
      %v1191 = vpop.f32.mrf.mxu0
      %v1192 = vadd.f32 0.0, %v1191
      %v1193 = vpop.f32.mrf.mxu0
      %1194 = vmatprep.mubr.bf16.mxu0 0
      %1195 = vmatmul.mubr.bf16.gmra.mxu0 %v1143
      %v1196 = vpop.f32.mrf.mxu0
      %v1197 = vadd.f32 0.0, %v1196
      %v1198 = vpop.f32.mrf.mxu0
      %v1199 = vpop.f32.mrf.mxu0
      %v1200 = vadd.f32 0.0, %v1199
      %v1201 = vpop.f32.mrf.mxu0
      %1202 = vmatprep.mubr.bf16.mxu0 0
      %1203 = vmatmul.mubr.bf16.gmra.mxu0 %v1146
      %v1204 = vpop.f32.mrf.mxu0
      %v1205 = vadd.f32 0.0, %v1204
      %v1206 = vpop.f32.mrf.mxu0
      %v1207 = vpop.f32.mrf.mxu0
      %v1208 = vadd.f32 0.0, %v1207
      %v1209 = vpop.f32.mrf.mxu0
      %1210 = vmatprep.mubr.bf16.mxu0 0
      %1211 = vmatmul.mubr.bf16.gmra.mxu0 %v1149
      %v1212 = vpop.f32.mrf.mxu0
      %v1213 = vadd.f32 0.0, %v1212
      %v1214 = vpop.f32.mrf.mxu0
      %v1215 = vpop.f32.mrf.mxu0
      %v1216 = vadd.f32 0.0, %v1215
      %v1217 = vpop.f32.mrf.mxu0
      %1218 = vmatprep.mubr.bf16.mxu0 0
      %1219 = vmatmul.mubr.bf16.gmra.mxu0 %v1152
      %v1220 = vpop.f32.mrf.mxu0
      %v1221 = vadd.f32 0.0, %v1220
      %v1222 = vpop.f32.mrf.mxu0
      %v1223 = vpop.f32.mrf.mxu0
      %v1224 = vpop.f32.mrf.mxu0
      %1225 = vdwg.mxu0
      %1226 = vst.msk [vmem:[#allocation3] sm:$0xff] %vm788, %v1189
      %1228 = vrot.lane.b32.xlu0 %v1192, 32
      %v1229 = vpop.permute.xlu0 %1228
      %1231 = vst.msk [vmem:[#allocation3] sm:$0xff] %vm799, %v1229
      %1233 = vrot.lane.b32.xlu0 %v1197, 64
      %v1234 = vpop.permute.xlu0 %1233
      %1236 = vst.msk [vmem:[#allocation3] sm:$0xff] %vm810, %v1234
      %1238 = vrot.lane.b32.xlu0 %v1200, 96
      %v1239 = vpop.permute.xlu0 %1238
      %1241 = vst.msk [vmem:[#allocation3] sm:$0xff] %vm821, %v1239
      %1242 = vst.msk [vmem:[#allocation3 + $0x8] sm:$0xff] %vm788, %v1205
      %1244 = vrot.lane.b32.xlu0 %v1208, 32
      %v1245 = vpop.permute.xlu0 %1244
      %1247 = vst.msk [vmem:[#allocation3 + $0x8] sm:$0xff] %vm799, %v1245
      %1249 = vrot.lane.b32.xlu0 %v1213, 64
      %v1250 = vpop.permute.xlu0 %1249
      %1252 = vst.msk [vmem:[#allocation3 + $0x8] sm:$0xff] %vm810, %v1250
      %1254 = vrot.lane.b32.xlu0 %v1216, 96
      %v1255 = vpop.permute.xlu0 %1254
      %1257 = vst.msk [vmem:[#allocation3 + $0x8] sm:$0xff] %vm821, %v1255
      %1258 = vst.msk [vmem:[#allocation3 + $0x10] sm:$0xff] %vm788, %v1221
      %v1259 = vld [vmem:[#allocation3] sm:$0xff]
      %v1260 = vld [vmem:[#allocation3 + $0x8] sm:$0xff]
      %v1261 = vld [vmem:[#allocation3 + $0x10] sm:$0xff]
      %v1262 = vpack.c.bf16 %v1259, %v1259
      %v1263 = vpack.c.bf16 %v1260, %v1260
      %v1264 = vpack.c.bf16 %v1261, %v1261
      %v1265 = vld [vmem:[%s7] sm:$0xf]
      %v1266 = vld [vmem:[%s7 + $0x4] sm:$0xf]
      %v1267 = vld [vmem:[%s7 + $0x8] sm:$0xf]
      %v1268 = vld [vmem:[%s7 + $0xc] sm:$0xf]
      %v1269 = vld [vmem:[%s7 + $0x10] sm:$0xf]
      %v1270 = vld [vmem:[%s7 + $0x14] sm:$0xf]
      %v1271 = vld [vmem:[%s7 + $0x18] sm:$0xf]
      %v1272 = vld [vmem:[%s7 + $0x1c] sm:$0xf]
      %v1273 = vld [vmem:[%s7 + $0x20] sm:$0xf]
      %v1274 = vld [vmem:[%s7 + $0x24] sm:$0xf]
      %v1275 = vld [vmem:[%s7 + $0x28] sm:$0xf]
      %v1276 = vld [vmem:[%s7 + $0x2c] sm:$0xf]
      %v1277 = vld [vmem:[%s7 + $0x30] sm:$0xf]
      %v1278 = vld [vmem:[%s7 + $0x34] sm:$0xf]
      %v1279 = vld [vmem:[%s7 + $0x38] sm:$0xf]
      %v1280 = vld [vmem:[%s7 + $0x3c] sm:$0xf]
      %v1281 = vld [vmem:[%s7 + $0x40] sm:$0xf]
      %v1282 = vld [vmem:[%s7 + $0x44] sm:$0xf]
      %v1283 = vld [vmem:[%s7 + $0x48] sm:$0xf]
      %v1284 = vld [vmem:[%s7 + $0x4c] sm:$0xf]
      %v1285 = vld [vmem:[%s7 + $0x50] sm:$0xf]
      %v1286 = vld [vmem:[%s7 + $0x54] sm:$0xf]
      %v1287 = vld [vmem:[%s7 + $0x58] sm:$0xf]
      %v1288 = vld [vmem:[%s7 + $0x5c] sm:$0xf]
      %v1289 = vld [vmem:[%s7 + $0x60] sm:$0xf]
      %v1290 = vld [vmem:[%s7 + $0x64] sm:$0xf]
      %v1291 = vld [vmem:[%s7 + $0x68] sm:$0xf]
      %v1292 = vld [vmem:[%s7 + $0x6c] sm:$0xf]
      %v1293 = vld [vmem:[%s7 + $0x70] sm:$0xf]
      %v1294 = vld [vmem:[%s7 + $0x74] sm:$0xf]
      %v1295 = vld [vmem:[%s7 + $0x78] sm:$0xf]
      %v1296 = vld [vmem:[%s7 + $0x7c] sm:$0xf]
      %v1297 = vld [vmem:[%s7 + $0x80] sm:$0xf]
      %v1298 = vld [vmem:[%s7 + $0x84] sm:$0xf]
      %v1299 = vld [vmem:[%s7 + $0x88] sm:$0xf]
      %v1300 = vld [vmem:[%s7 + $0x8c] sm:$0xf]
      %v1301 = vld [vmem:[%s8] sm:$0x1]
      %v1303 = vlaneseq
      %v1304 = vshrl.u32 %v1303, 7
      %v1305 = vsub.s32 0, %v1304
      %v1306 = vrot.slane %v1301, %v1305
      %v1344 = vunpack.c.l.b16 %v1265
      %v1345 = vunpack.c.l.b16 %v1266
      %v1346 = vunpack.c.l.b16 %v1267
      %v1347 = vunpack.c.l.b16 %v1268
      %v1348 = vunpack.c.l.b16 %v1269
      %v1349 = vunpack.c.l.b16 %v1270
      %v1350 = vunpack.c.l.b16 %v1271
      %v1351 = vunpack.c.l.b16 %v1272
      %v1352 = vunpack.c.l.b16 %v1273
      %v1353 = vunpack.c.l.b16 %v1274
      %v1354 = vunpack.c.l.b16 %v1275
      %v1355 = vunpack.c.l.b16 %v1276
      %v1356 = vunpack.c.l.b16 %v1277
      %v1357 = vunpack.c.l.b16 %v1278
      %v1358 = vunpack.c.l.b16 %v1279
      %v1359 = vunpack.c.l.b16 %v1280
      %v1360 = vunpack.c.l.b16 %v1281
      %v1361 = vunpack.c.l.b16 %v1282
      %v1362 = vunpack.c.l.b16 %v1283
      %v1363 = vunpack.c.l.b16 %v1284
      %v1364 = vunpack.c.l.b16 %v1285
      %v1365 = vunpack.c.l.b16 %v1286
      %v1366 = vunpack.c.l.b16 %v1287
      %v1367 = vunpack.c.l.b16 %v1288
      %v1368 = vunpack.c.l.b16 %v1289
      %v1369 = vunpack.c.l.b16 %v1290
      %v1370 = vunpack.c.l.b16 %v1291
      %v1371 = vunpack.c.l.b16 %v1292
      %v1372 = vunpack.c.l.b16 %v1293
      %v1373 = vunpack.c.l.b16 %v1294
      %v1374 = vunpack.c.l.b16 %v1295
      %v1375 = vunpack.c.l.b16 %v1296
      %v1376 = vunpack.c.l.b16 %v1297
      %v1377 = vunpack.c.l.b16 %v1298
      %v1378 = vunpack.c.l.b16 %v1299
      %v1379 = vunpack.c.l.b16 %v1300
      %v1380 = vpack.c.b16 %v1345, %v1344
      %v1381 = vpack.c.b16 %v1347, %v1346
      %v1382 = vpack.c.b16 %v1349, %v1348
      %v1383 = vpack.c.b16 %v1351, %v1350
      %v1384 = vpack.c.b16 %v1353, %v1352
      %v1385 = vpack.c.b16 %v1355, %v1354
      %v1386 = vpack.c.b16 %v1357, %v1356
      %v1387 = vpack.c.b16 %v1359, %v1358
      %v1388 = vpack.c.b16 %v1361, %v1360
      %v1389 = vpack.c.b16 %v1363, %v1362
      %v1390 = vpack.c.b16 %v1365, %v1364
      %v1391 = vpack.c.b16 %v1367, %v1366
      %v1392 = vpack.c.b16 %v1369, %v1368
      %v1393 = vpack.c.b16 %v1371, %v1370
      %v1394 = vpack.c.b16 %v1373, %v1372
      %v1395 = vpack.c.b16 %v1375, %v1374
      %v1396 = vpack.c.b16 %v1377, %v1376
      %v1397 = vpack.c.b16 %v1379, %v1378
      %v1417 = vsel %vm788, %v1264, 0
      %1419 = vmatprep.subr.bf16.mxu0 0
      %1420 = vmatpush1.bf16.msra.mxu0 %v1387
      %1421 = vmatprep.subr.bf16.mxu0 0
      %1422 = vmatpush1.bf16.msra.mxu0 %v1386
      %1423 = vmatprep.subr.bf16.mxu0 0
      %1424 = vmatpush1.bf16.msra.mxu0 %v1385
      %1425 = vmatprep.subr.bf16.mxu0 0
      %1426 = vmatpush1.bf16.msra.mxu0 %v1384
      %1427 = vmatprep.subr.bf16.mxu0 0
      %1428 = vmatpush1.bf16.msra.mxu0 %v1383
      %1429 = vmatprep.subr.bf16.mxu0 0
      %1430 = vmatpush1.bf16.msra.mxu0 %v1382
      %1431 = vmatprep.subr.bf16.mxu0 0
      %1432 = vmatpush1.bf16.msra.mxu0 %v1381
      %1433 = vmatprep.subr.bf16.mxu0 0
      %1434 = vmatpush1.bf16.msra.mxu0 %v1380
      %1435 = vmatprep.subr.bf16.mxu0 0
      %1436 = vmatpush2.bf16.msra.mxu0 %v1395
      %1437 = vmatprep.subr.bf16.mxu0 0
      %1438 = vmatpush2.bf16.msra.mxu0 %v1394
      %1439 = vmatprep.subr.bf16.mxu0 0
      %1440 = vmatpush2.bf16.msra.mxu0 %v1393
      %1441 = vmatprep.subr.bf16.mxu0 0
      %1442 = vmatpush2.bf16.msra.mxu0 %v1392
      %1443 = vmatprep.subr.bf16.mxu0 0
      %1444 = vmatpush2.bf16.msra.mxu0 %v1391
      %1445 = vmatprep.subr.bf16.mxu0 0
      %1446 = vmatpush2.bf16.msra.mxu0 %v1390
      %1447 = vmatprep.subr.bf16.mxu0 0
      %1448 = vmatpush2.bf16.msra.mxu0 %v1389
      %1449 = vmatprep.subr.bf16.mxu0 0
      %1450 = vmatpush2.bf16.msra.mxu0 %v1388
      %1451 = vmatprep.mubr.bf16.mxu0 %v1263
      %1452 = vmatmul.mubr.bf16.gmra.mxu0 %v1262
      %v1453 = vpop.f32.mrf.mxu0
      %v1454 = vadd.f32 %v1306, %v1453
      %v1455 = vpop.f32.mrf.mxu0
      %v1456 = vpop.f32.mrf.mxu0
      %v1457 = vpop.f32.mrf.mxu0
      %1458 = vdwg.mxu0
      %1459 = vmatprep.subr.bf16.mxu0 0
      %1460 = vmatpush1.bf16.msra.mxu0 0
      %1461 = vmatprep.subr.bf16.mxu0 0
      %1462 = vmatpush1.bf16.msra.mxu0 0
      %1463 = vmatprep.subr.bf16.mxu0 0
      %1464 = vmatpush1.bf16.msra.mxu0 0
      %1465 = vmatprep.subr.bf16.mxu0 0
      %1466 = vmatpush1.bf16.msra.mxu0 0
      %1467 = vmatprep.subr.bf16.mxu0 0
      %1468 = vmatpush1.bf16.msra.mxu0 0
      %1469 = vmatprep.subr.bf16.mxu0 0
      %1470 = vmatpush1.bf16.msra.mxu0 0
      %1471 = vmatprep.subr.bf16.mxu0 0
      %1472 = vmatpush1.bf16.msra.mxu0 %v1397
      %1473 = vmatprep.subr.bf16.mxu0 0
      %1474 = vmatpush1.bf16.msra.mxu0 %v1396
      %1475 = vmatprep.subr.bf16.mxu0 0
      %1476 = vmatpush2.bf16.msra.mxu0 0
      %1477 = vmatprep.subr.bf16.mxu0 0
      %1478 = vmatpush2.bf16.msra.mxu0 0
      %1479 = vmatprep.subr.bf16.mxu0 0
      %1480 = vmatpush2.bf16.msra.mxu0 0
      %1481 = vmatprep.subr.bf16.mxu0 0
      %1482 = vmatpush2.bf16.msra.mxu0 0
      %1483 = vmatprep.subr.bf16.mxu0 0
      %1484 = vmatpush2.bf16.msra.mxu0 0
      %1485 = vmatprep.subr.bf16.mxu0 0
      %1486 = vmatpush2.bf16.msra.mxu0 0
      %1487 = vmatprep.subr.bf16.mxu0 0
      %1488 = vmatpush2.bf16.msra.mxu0 0
      %1489 = vmatprep.subr.bf16.mxu0 0
      %1490 = vmatpush2.bf16.msra.mxu0 0
      %1491 = vmatprep.mubr.bf16.mxu0 0
      %1492 = vmatmul.mubr.bf16.gmra.mxu0 %v1417
      %v1493 = vpop.f32.mrf.mxu0
      %v1494 = vadd.f32 %v1454, %v1493
      %v1495 = vpop.f32.mrf.mxu0
      %v1496 = vpop.f32.mrf.mxu0
      %v1497 = vpop.f32.mrf.mxu0
      %1498 = vdwg.mxu0
      %v1499 = vmax.f32 %v1494, 0.0
      %1500 = vst.msk [vmem:[%s330] sm:$0xff] %vm788, %v1499
      %p1501 = scmp.lt.s32.totalorder %s20, 1
      %s1502 = scalar_select %p1501, %s20, 1
      %s1503 = smul.addr %s1502, 8
      %s1504 = scalar_lea.vmem %s9, %s1503
      // Predicated region
      $region57: #{shared_net_forward.1} parent=55 // pred_check
        %p1505 = pneg %p232
      $region58: #{shared_net_forward.1} parent=55 // pred_check_branch
        %1507 = sbr.rel (%p1505) target = $region60
      $region59: #{shared_net_forward.1} parent=55 // pred_region
        _
      $region60: #{shared_net_forward.1} parent=55 // pred_fallthru
        _
    $region56: #{shared_net_forward.1} parent=5 // pred_fallthru
      _
    %p1508 = scmp.le.s32.totalorder 2, %s15
    // Predicated region
    $region61: #{shared_net_forward.1} parent=5 // pred_check
      %p1509 = pneg %p1508
    $region62: #{shared_net_forward.1} parent=5 // pred_check_branch
      %1511 = sbr.rel (%p1509) target = $region64
    $region63: #{shared_net_forward.1} parent=5 // pred_region
      %s1512 = ssub.s32 %s15, 2
      // Predicated region
      $region65: #{shared_net_forward.1} parent=63 // pred_check
        %p1513 = pneg %p238
      $region66: #{shared_net_forward.1} parent=63 // pred_check_branch
        %1515 = sbr.rel (%p1513) target = $region68
      $region67: #{shared_net_forward.1} parent=63 // pred_region
        %p1516 = scmp.lt.s32.totalorder %s21, 1
        %s1517 = scalar_select %p1516, %s21, 1
        %s1518 = smul.addr %s1517, 8
        %s1519 = scalar_lea.vmem %s9, %s1518
      $region68: #{shared_net_forward.1} parent=63 // pred_fallthru
        _
    $region64: #{shared_net_forward.1} parent=5 // pred_fallthru
      _
  $region6: #{shared_net_forward.1} parent=0 // loop_footer
    %s19 = sadd.s32 1, %s15
  $region7: #{shared_net_forward.1} parent=0 // loop_footer_branch
    %14 = sbr.rel target = $region3
  $region8: #{shared_net_forward.1} parent=0 // loop_exit
    _

</llo_original>
